<compile_context>
chip_gen: v6e
topology: v6e:2x2x1
jax: 0.10.0
libtpu: 0.0.40
codegen_flags: <defaults>
</compile_context>

<pallas_src>
import numpy as np
import jax
import jax.numpy as jnp
from jax.experimental import pallas as pl
from jax.experimental.pallas import tpu as pltpu

# ---------------- module-consistent sizes (small, as implied by the forward) ----------------
B = 2          # batch
L = 8          # sequence length
E = 32         # input_size == embed_size
H = 4          # num_attn_heads
F = 2          # mlp_embed_factor
LN_EPS = 1e-5  # torch nn.LayerNorm default


# ====================== fused TransformerUnit kernel (whole batch, no grid) ======================
def transformer_unit_kernel(x_ref, wqkv_ref, wz_ref, bz_ref,
                            g1_ref, b1_ref, wf1_ref, bf1_ref,
                            wf2_ref, bf2_ref, g2_ref, b2_ref,
                            z_out_ref, attn_out_ref):
    Bb, Ll, Ee = x_ref.shape
    Hh = attn_out_ref.shape[0]
    M = Bb * Ll                                           # fold batch into matmul M dim

    def linear(a, w_ref, b_ref=None):
        # a: (M, in); w_ref: (out, in) torch Linear weight  ->  a @ W.T : (M, out)
        y = jax.lax.dot_general(a, w_ref[...], (((1,), (1,)), ((), ())),
                                preferred_element_type=jnp.float32)
        return y if b_ref is None else y + b_ref[...]

    def layer_norm(h, g_ref, b_ref):
        mu = jnp.mean(h, axis=-1, keepdims=True)
        c = h - mu
        var = jnp.mean(c * c, axis=-1, keepdims=True)
        return c * jax.lax.rsqrt(var + LN_EPS) * g_ref[...] + b_ref[...]

    x = x_ref[...]                                        # (B, L, E)
    xf = x.reshape(M, Ee)                                 # (16, 32) -- layout-preserving

    # ---- fused QKV projection: one lane-dense (16,32)@(32,384) MXU op ----
    qkv = linear(xf, wqkv_ref)                            # (M, 3*H*E)

    inv_scale = 1.0 / float(np.sqrt(Ee))                  # (q/E^.25).(k/E^.25) == (q.k)/sqrt(E)

    z_heads = []
    for h in range(Hh):                                   # static unroll over heads
        q = qkv[:, h * Ee:(h + 1) * Ee].reshape(Bb, Ll, Ee)
        k = qkv[:, (Hh + h) * Ee:(Hh + h + 1) * Ee].reshape(Bb, Ll, Ee)
        v = qkv[:, (2 * Hh + h) * Ee:(2 * Hh + h + 1) * Ee].reshape(Bb, Ll, Ee)

        s = jnp.einsum('bqd,bkd->bqk', q, k,
                       preferred_element_type=jnp.float32) * inv_scale    # (B, L, L)
        s = s - jnp.max(s, axis=-1, keepdims=True)
        p = jnp.exp(s)
        denom = jnp.sum(p, axis=-1, keepdims=True)
        attn = p * pl.reciprocal(denom, approx=True)      # softmax(dim=2), EUP reciprocal
        attn_out_ref[h] = attn                            # (B, L, L)

        zh = jnp.einsum('bqk,bkd->bqd', attn, v,
                        preferred_element_type=jnp.float32)               # (B, L, E)
        z_heads.append(zh.reshape(M, Ee))

    zcat = jnp.concatenate(z_heads, axis=-1)              # (M, H*E) = (16, 128), lane-dense
    z = linear(zcat, wz_ref, bz_ref)                      # Wz: (E, H*E) -> (M, E)

    # ---- residual + LayerNorm 1 (dropout == identity in eval) ----
    h1 = layer_norm(z + xf, g1_ref, b1_ref)

    # ---- MLP: Linear(E, F*E) -> ReLU -> Linear(F*E, E) ----
    ff = jnp.maximum(linear(h1, wf1_ref, bf1_ref), 0.0)   # (M, F*E)
    ff = linear(ff, wf2_ref, bf2_ref)                     # (M, E)

    # ---- residual + LayerNorm 2 ----
    out = layer_norm(ff + h1, g2_ref, b2_ref)
    z_out_ref[...] = out.reshape(Bb, Ll, Ee)


def transformer_unit_pallas(x, params):
    Bb, Ll, Ee = x.shape
    Hh = params['wq'].shape[0]

    # stack per-head Wq/Wk/Wv into one (3*H*E, E) weight => single fused QKV matmul in-kernel
    wqkv = jnp.concatenate([params['wq'], params['wk'], params['wv']], axis=0)
    wqkv = wqkv.reshape(3 * Hh * Ee, Ee)

    inputs = (x, wqkv, params['wz'], params['bz'],
              params['g1'], params['b1'], params['wf1'], params['bf1'],
              params['wf2'], params['bf2'], params['g2'], params['b2'])

    vmem = pl.BlockSpec(memory_space=pltpu.MemorySpace.VMEM)
    z, attn = pl.pallas_call(
        transformer_unit_kernel,
        out_shape=(jax.ShapeDtypeStruct((Bb, Ll, Ee), jnp.float32),
                   jax.ShapeDtypeStruct((Hh, Bb, Ll, Ll), jnp.float32)),
        in_specs=[vmem] * len(inputs),
        out_specs=(vmem, vmem),
    )(*inputs)

    attn_dict = {f'h{h}': attn[h] for h in range(Hh)}     # per-head (B, L, L), torch-style dict
    return z, attn_dict


transformer_unit_pallas_jit = jax.jit(transformer_unit_pallas)


# ============================== pure-JAX reference (torch math) ==============================
def _ln_ref(h, g, b):
    mu = jnp.mean(h, axis=-1, keepdims=True)
    var = jnp.mean((h - mu) ** 2, axis=-1, keepdims=True)
    return (h - mu) / jnp.sqrt(var + LN_EPS) * g + b


def transformer_unit_ref(x, p):
    scale = float(E) ** 0.25
    heads, attn_d = [], {}
    for h in range(H):
        q = x @ p['wq'][h].T
        k = x @ p['wk'][h].T
        v = x @ p['wv'][h].T
        s = jnp.einsum('bld,bmd->blm', q / scale, k / scale)
        a = jax.nn.softmax(s, axis=-1)
        attn_d[f'h{h}'] = a
        heads.append(jnp.einsum('blm,bmd->bld', a, v))
    z = jnp.concatenate(heads, -1) @ p['wz'].T + p['bz'][0]
    h1 = _ln_ref(z + x, p['g1'][0], p['b1'][0])
    ff = jnp.maximum(h1 @ p['wf1'].T + p['bf1'][0], 0.0)
    ff = ff @ p['wf2'].T + p['bf2'][0]
    out = _ln_ref(ff + h1, p['g2'][0], p['b2'][0])
    return out, attn_d


# ==================================== deterministic params ====================================
def init_params(key):
    ks = jax.random.split(key, 11)

    def nrm(k, shape, scale):
        return jax.random.normal(k, shape, jnp.float32) * scale

    return {
        'wq': nrm(ks[0], (H, E, E), 1.0 / np.sqrt(E)),
        'wk': nrm(ks[1], (H, E, E), 1.0 / np.sqrt(E)),
        'wv': nrm(ks[2], (H, E, E), 1.0 / np.sqrt(E)),
        'wz': nrm(ks[3], (E, H * E), 1.0 / np.sqrt(H * E)),
        'bz': nrm(ks[4], (1, E), 0.1),
        'g1': 1.0 + nrm(ks[5], (1, E), 0.1),
        'b1': nrm(ks[6], (1, E), 0.1),
        'wf1': nrm(ks[7], (F * E, E), 1.0 / np.sqrt(E)),
        'bf1': nrm(ks[8], (1, F * E), 0.1),
        'wf2': nrm(ks[9], (E, F * E), 1.0 / np.sqrt(F * E)),
        'bf2': nrm(ks[10], (1, E), 0.1),
        'g2': jnp.ones((1, E), jnp.float32),
        'b2': jnp.zeros((1, E), jnp.float32),
    }


# ============================================ main ============================================
if __name__ == "__main__":
    key = jax.random.PRNGKey(0)
    pkey, xkey = jax.random.split(key)
    params = init_params(pkey)
    x = jax.random.normal(xkey, (B, L, E), jnp.float32)

    z, attn_dict = transformer_unit_pallas_jit(x, params)
    jax.block_until_ready((z, attn_dict))

    # correctness check vs. pure-JAX reference of the torch math
    z_ref, attn_ref_d = transformer_unit_ref(x, params)
    assert z.shape == (B, L, E)
    assert np.allclose(np.asarray(z), np.asarray(z_ref), atol=5e-3, rtol=5e-3)
    for h in range(H):
        a = attn_dict[f'h{h}']
        assert a.shape == (B, L, L)
        assert np.allclose(np.asarray(a), np.asarray(attn_ref_d[f'h{h}']), atol=5e-3, rtol=5e-3)

    print("KERNEL_OK")
</pallas_src>

<mosaic_0001>
module attributes {stable_mosaic.version = 11 : i64} {
  func.func @transformer_unit_kernel(%arg0: memref<2x8x32xf32, #tpu.memory_space<vmem>>, %arg1: memref<384x32xf32, #tpu.memory_space<vmem>>, %arg2: memref<32x128xf32, #tpu.memory_space<vmem>>, %arg3: memref<1x32xf32, #tpu.memory_space<vmem>>, %arg4: memref<1x32xf32, #tpu.memory_space<vmem>>, %arg5: memref<1x32xf32, #tpu.memory_space<vmem>>, %arg6: memref<64x32xf32, #tpu.memory_space<vmem>>, %arg7: memref<1x64xf32, #tpu.memory_space<vmem>>, %arg8: memref<32x64xf32, #tpu.memory_space<vmem>>, %arg9: memref<1x32xf32, #tpu.memory_space<vmem>>, %arg10: memref<1x32xf32, #tpu.memory_space<vmem>>, %arg11: memref<1x32xf32, #tpu.memory_space<vmem>>, %arg12: memref<2x8x32xf32, #tpu.memory_space<vmem>>, %arg13: memref<4x2x8x8xf32, #tpu.memory_space<vmem>>) attributes {dimension_semantics = [], scalar_prefetch = 0 : i64, scratch_operands = 0 : i64, tpu.core_type = #tpu.core_type<tc>} {
    %c0 = arith.constant 0 : index
    %c0_0 = arith.constant 0 : index
    %c0_1 = arith.constant 0 : index
    %0 = vector.load %arg0[%c0, %c0_0, %c0_1] : memref<2x8x32xf32, #tpu.memory_space<vmem>>, vector<2x8x32xf32>
    %1 = vector.shape_cast %0 : vector<2x8x32xf32> to vector<16x32xf32>
    %c0_2 = arith.constant 0 : index
    %c0_3 = arith.constant 0 : index
    %2 = vector.load %arg1[%c0_2, %c0_3] : memref<384x32xf32, #tpu.memory_space<vmem>>, vector<384x32xf32>
    %cst = arith.constant dense<0.000000e+00> : vector<16x384xf32>
    %3 = tpu.matmul %1, %2, %cst {dimension_numbers = #tpu.dot_dimension_numbers<[1], [1], [0], [0], [0, 0, 1, 0], [], []>} : vector<16x32xf32>, vector<384x32xf32>, vector<16x384xf32> -> vector<16x384xf32>
    %4 = vector.extract_strided_slice %3 {offsets = [0, 0], sizes = [16, 32], strides = [1, 1]} : vector<16x384xf32> to vector<16x32xf32>
    %5 = vector.shape_cast %4 : vector<16x32xf32> to vector<2x8x32xf32>
    %6 = vector.extract_strided_slice %3 {offsets = [0, 128], sizes = [16, 32], strides = [1, 1]} : vector<16x384xf32> to vector<16x32xf32>
    %7 = vector.shape_cast %6 : vector<16x32xf32> to vector<2x8x32xf32>
    %8 = vector.extract_strided_slice %3 {offsets = [0, 256], sizes = [16, 32], strides = [1, 1]} : vector<16x384xf32> to vector<16x32xf32>
    %9 = vector.shape_cast %8 : vector<16x32xf32> to vector<2x8x32xf32>
    "tpu.trace_start"() <{level = 10 : i32, message = "bqd,bkd->bqk"}> : () -> ()
    %cst_4 = arith.constant dense<0.000000e+00> : vector<2x8x8xf32>
    %10 = tpu.matmul %5, %7, %cst_4 {dimension_numbers = #tpu.dot_dimension_numbers<[2], [2], [1], [1], [0, 0, 0, 1, 1, 1], [0], [0]>} : vector<2x8x32xf32>, vector<2x8x32xf32>, vector<2x8x8xf32> -> vector<2x8x8xf32>
    "tpu.trace_stop"() : () -> ()
    %cst_5 = arith.constant 0.176776692 : f32
    %11 = vector.broadcast %cst_5 : f32 to vector<2x8x8xf32>
    %12 = arith.mulf %10, %11 : vector<2x8x8xf32>
    %cst_6 = arith.constant dense<0xFF800000> : vector<2x8xf32>
    %13 = vector.multi_reduction <maximumf>, %12, %cst_6 [2] : vector<2x8x8xf32> to vector<2x8xf32>
    %14 = vector.shape_cast %13 : vector<2x8xf32> to vector<2x8x1xf32>
    %15 = vector.broadcast %14 : vector<2x8x1xf32> to vector<2x8x8xf32>
    %16 = arith.subf %12, %15 : vector<2x8x8xf32>
    %17 = math.exp %16 : vector<2x8x8xf32>
    %cst_7 = arith.constant dense<0.000000e+00> : vector<2x8xf32>
    %18 = vector.multi_reduction <add>, %17, %cst_7 [2] : vector<2x8x8xf32> to vector<2x8xf32>
    %19 = vector.shape_cast %18 : vector<2x8xf32> to vector<2x8x1xf32>
    %20 = tpu.reciprocal %19 {approx = true} : vector<2x8x1xf32> -> vector<2x8x1xf32>
    %21 = vector.broadcast %20 : vector<2x8x1xf32> to vector<2x8x8xf32>
    %22 = arith.mulf %17, %21 : vector<2x8x8xf32>
    %c0_8 = arith.constant 0 : index
    %c0_9 = arith.constant 0 : index
    %c0_10 = arith.constant 0 : index
    %c0_11 = arith.constant 0 : index
    %23 = vector.load %arg13[%c0_8, %c0_9, %c0_10, %c0_11] : memref<4x2x8x8xf32, #tpu.memory_space<vmem>>, vector<1x2x8x8xf32>
    %24 = vector.shape_cast %23 : vector<1x2x8x8xf32> to vector<2x8x8xf32>
    %25 = vector.shape_cast %22 : vector<2x8x8xf32> to vector<1x2x8x8xf32>
    tpu.vector_store %arg13[%c0_8, %c0_9, %c0_10, %c0_11], %25 {strides = array<i32>} : memref<4x2x8x8xf32, #tpu.memory_space<vmem>>, vector<1x2x8x8xf32>,
    "tpu.trace_start"() <{level = 10 : i32, message = "bqk,bkd->bqd"}> : () -> ()
    %cst_12 = arith.constant dense<0.000000e+00> : vector<2x8x32xf32>
    %26 = tpu.matmul %22, %9, %cst_12 {dimension_numbers = #tpu.dot_dimension_numbers<[2], [1], [1], [2], [0, 0, 0, 1, 1, 2], [0], [0]>} : vector<2x8x8xf32>, vector<2x8x32xf32>, vector<2x8x32xf32> -> vector<2x8x32xf32>
    "tpu.trace_stop"() : () -> ()
    %27 = vector.shape_cast %26 : vector<2x8x32xf32> to vector<16x32xf32>
    %28 = vector.extract_strided_slice %3 {offsets = [0, 32], sizes = [16, 32], strides = [1, 1]} : vector<16x384xf32> to vector<16x32xf32>
    %29 = vector.shape_cast %28 : vector<16x32xf32> to vector<2x8x32xf32>
    %30 = vector.extract_strided_slice %3 {offsets = [0, 160], sizes = [16, 32], strides = [1, 1]} : vector<16x384xf32> to vector<16x32xf32>
    %31 = vector.shape_cast %30 : vector<16x32xf32> to vector<2x8x32xf32>
    %32 = vector.extract_strided_slice %3 {offsets = [0, 288], sizes = [16, 32], strides = [1, 1]} : vector<16x384xf32> to vector<16x32xf32>
    %33 = vector.shape_cast %32 : vector<16x32xf32> to vector<2x8x32xf32>
    "tpu.trace_start"() <{level = 10 : i32, message = "bqd,bkd->bqk"}> : () -> ()
    %cst_13 = arith.constant dense<0.000000e+00> : vector<2x8x8xf32>
    %34 = tpu.matmul %29, %31, %cst_13 {dimension_numbers = #tpu.dot_dimension_numbers<[2], [2], [1], [1], [0, 0, 0, 1, 1, 1], [0], [0]>} : vector<2x8x32xf32>, vector<2x8x32xf32>, vector<2x8x8xf32> -> vector<2x8x8xf32>
    "tpu.trace_stop"() : () -> ()
    %cst_14 = arith.constant 0.176776692 : f32
    %35 = vector.broadcast %cst_14 : f32 to vector<2x8x8xf32>
    %36 = arith.mulf %34, %35 : vector<2x8x8xf32>
    %cst_15 = arith.constant dense<0xFF800000> : vector<2x8xf32>
    %37 = vector.multi_reduction <maximumf>, %36, %cst_15 [2] : vector<2x8x8xf32> to vector<2x8xf32>
    %38 = vector.shape_cast %37 : vector<2x8xf32> to vector<2x8x1xf32>
    %39 = vector.broadcast %38 : vector<2x8x1xf32> to vector<2x8x8xf32>
    %40 = arith.subf %36, %39 : vector<2x8x8xf32>
    %41 = math.exp %40 : vector<2x8x8xf32>
    %cst_16 = arith.constant dense<0.000000e+00> : vector<2x8xf32>
    %42 = vector.multi_reduction <add>, %41, %cst_16 [2] : vector<2x8x8xf32> to vector<2x8xf32>
    %43 = vector.shape_cast %42 : vector<2x8xf32> to vector<2x8x1xf32>
    %44 = tpu.reciprocal %43 {approx = true} : vector<2x8x1xf32> -> vector<2x8x1xf32>
    %45 = vector.broadcast %44 : vector<2x8x1xf32> to vector<2x8x8xf32>
    %46 = arith.mulf %41, %45 : vector<2x8x8xf32>
    %c1 = arith.constant 1 : index
    %c0_17 = arith.constant 0 : index
    %c0_18 = arith.constant 0 : index
    %c0_19 = arith.constant 0 : index
    %47 = vector.load %arg13[%c1, %c0_17, %c0_18, %c0_19] : memref<4x2x8x8xf32, #tpu.memory_space<vmem>>, vector<1x2x8x8xf32>
    %48 = vector.shape_cast %47 : vector<1x2x8x8xf32> to vector<2x8x8xf32>
    %49 = vector.shape_cast %46 : vector<2x8x8xf32> to vector<1x2x8x8xf32>
    tpu.vector_store %arg13[%c1, %c0_17, %c0_18, %c0_19], %49 {strides = array<i32>} : memref<4x2x8x8xf32, #tpu.memory_space<vmem>>, vector<1x2x8x8xf32>,
    "tpu.trace_start"() <{level = 10 : i32, message = "bqk,bkd->bqd"}> : () -> ()
    %cst_20 = arith.constant dense<0.000000e+00> : vector<2x8x32xf32>
    %50 = tpu.matmul %46, %33, %cst_20 {dimension_numbers = #tpu.dot_dimension_numbers<[2], [1], [1], [2], [0, 0, 0, 1, 1, 2], [0], [0]>} : vector<2x8x8xf32>, vector<2x8x32xf32>, vector<2x8x32xf32> -> vector<2x8x32xf32>
    "tpu.trace_stop"() : () -> ()
    %51 = vector.shape_cast %50 : vector<2x8x32xf32> to vector<16x32xf32>
    %52 = vector.extract_strided_slice %3 {offsets = [0, 64], sizes = [16, 32], strides = [1, 1]} : vector<16x384xf32> to vector<16x32xf32>
    %53 = vector.shape_cast %52 : vector<16x32xf32> to vector<2x8x32xf32>
    %54 = vector.extract_strided_slice %3 {offsets = [0, 192], sizes = [16, 32], strides = [1, 1]} : vector<16x384xf32> to vector<16x32xf32>
    %55 = vector.shape_cast %54 : vector<16x32xf32> to vector<2x8x32xf32>
    %56 = vector.extract_strided_slice %3 {offsets = [0, 320], sizes = [16, 32], strides = [1, 1]} : vector<16x384xf32> to vector<16x32xf32>
    %57 = vector.shape_cast %56 : vector<16x32xf32> to vector<2x8x32xf32>
    "tpu.trace_start"() <{level = 10 : i32, message = "bqd,bkd->bqk"}> : () -> ()
    %cst_21 = arith.constant dense<0.000000e+00> : vector<2x8x8xf32>
    %58 = tpu.matmul %53, %55, %cst_21 {dimension_numbers = #tpu.dot_dimension_numbers<[2], [2], [1], [1], [0, 0, 0, 1, 1, 1], [0], [0]>} : vector<2x8x32xf32>, vector<2x8x32xf32>, vector<2x8x8xf32> -> vector<2x8x8xf32>
    "tpu.trace_stop"() : () -> ()
    %cst_22 = arith.constant 0.176776692 : f32
    %59 = vector.broadcast %cst_22 : f32 to vector<2x8x8xf32>
    %60 = arith.mulf %58, %59 : vector<2x8x8xf32>
    %cst_23 = arith.constant dense<0xFF800000> : vector<2x8xf32>
    %61 = vector.multi_reduction <maximumf>, %60, %cst_23 [2] : vector<2x8x8xf32> to vector<2x8xf32>
    %62 = vector.shape_cast %61 : vector<2x8xf32> to vector<2x8x1xf32>
    %63 = vector.broadcast %62 : vector<2x8x1xf32> to vector<2x8x8xf32>
    %64 = arith.subf %60, %63 : vector<2x8x8xf32>
    %65 = math.exp %64 : vector<2x8x8xf32>
    %cst_24 = arith.constant dense<0.000000e+00> : vector<2x8xf32>
    %66 = vector.multi_reduction <add>, %65, %cst_24 [2] : vector<2x8x8xf32> to vector<2x8xf32>
    %67 = vector.shape_cast %66 : vector<2x8xf32> to vector<2x8x1xf32>
    %68 = tpu.reciprocal %67 {approx = true} : vector<2x8x1xf32> -> vector<2x8x1xf32>
    %69 = vector.broadcast %68 : vector<2x8x1xf32> to vector<2x8x8xf32>
    %70 = arith.mulf %65, %69 : vector<2x8x8xf32>
    %c2 = arith.constant 2 : index
    %c0_25 = arith.constant 0 : index
    %c0_26 = arith.constant 0 : index
    %c0_27 = arith.constant 0 : index
    %71 = vector.load %arg13[%c2, %c0_25, %c0_26, %c0_27] : memref<4x2x8x8xf32, #tpu.memory_space<vmem>>, vector<1x2x8x8xf32>
    %72 = vector.shape_cast %71 : vector<1x2x8x8xf32> to vector<2x8x8xf32>
    %73 = vector.shape_cast %70 : vector<2x8x8xf32> to vector<1x2x8x8xf32>
    tpu.vector_store %arg13[%c2, %c0_25, %c0_26, %c0_27], %73 {strides = array<i32>} : memref<4x2x8x8xf32, #tpu.memory_space<vmem>>, vector<1x2x8x8xf32>,
    "tpu.trace_start"() <{level = 10 : i32, message = "bqk,bkd->bqd"}> : () -> ()
    %cst_28 = arith.constant dense<0.000000e+00> : vector<2x8x32xf32>
    %74 = tpu.matmul %70, %57, %cst_28 {dimension_numbers = #tpu.dot_dimension_numbers<[2], [1], [1], [2], [0, 0, 0, 1, 1, 2], [0], [0]>} : vector<2x8x8xf32>, vector<2x8x32xf32>, vector<2x8x32xf32> -> vector<2x8x32xf32>
    "tpu.trace_stop"() : () -> ()
    %75 = vector.shape_cast %74 : vector<2x8x32xf32> to vector<16x32xf32>
    %76 = vector.extract_strided_slice %3 {offsets = [0, 96], sizes = [16, 32], strides = [1, 1]} : vector<16x384xf32> to vector<16x32xf32>
    %77 = vector.shape_cast %76 : vector<16x32xf32> to vector<2x8x32xf32>
    %78 = vector.extract_strided_slice %3 {offsets = [0, 224], sizes = [16, 32], strides = [1, 1]} : vector<16x384xf32> to vector<16x32xf32>
    %79 = vector.shape_cast %78 : vector<16x32xf32> to vector<2x8x32xf32>
    %80 = vector.extract_strided_slice %3 {offsets = [0, 352], sizes = [16, 32], strides = [1, 1]} : vector<16x384xf32> to vector<16x32xf32>
    %81 = vector.shape_cast %80 : vector<16x32xf32> to vector<2x8x32xf32>
    "tpu.trace_start"() <{level = 10 : i32, message = "bqd,bkd->bqk"}> : () -> ()
    %cst_29 = arith.constant dense<0.000000e+00> : vector<2x8x8xf32>
    %82 = tpu.matmul %77, %79, %cst_29 {dimension_numbers = #tpu.dot_dimension_numbers<[2], [2], [1], [1], [0, 0, 0, 1, 1, 1], [0], [0]>} : vector<2x8x32xf32>, vector<2x8x32xf32>, vector<2x8x8xf32> -> vector<2x8x8xf32>
    "tpu.trace_stop"() : () -> ()
    %cst_30 = arith.constant 0.176776692 : f32
    %83 = vector.broadcast %cst_30 : f32 to vector<2x8x8xf32>
    %84 = arith.mulf %82, %83 : vector<2x8x8xf32>
    %cst_31 = arith.constant dense<0xFF800000> : vector<2x8xf32>
    %85 = vector.multi_reduction <maximumf>, %84, %cst_31 [2] : vector<2x8x8xf32> to vector<2x8xf32>
    %86 = vector.shape_cast %85 : vector<2x8xf32> to vector<2x8x1xf32>
    %87 = vector.broadcast %86 : vector<2x8x1xf32> to vector<2x8x8xf32>
    %88 = arith.subf %84, %87 : vector<2x8x8xf32>
    %89 = math.exp %88 : vector<2x8x8xf32>
    %cst_32 = arith.constant dense<0.000000e+00> : vector<2x8xf32>
    %90 = vector.multi_reduction <add>, %89, %cst_32 [2] : vector<2x8x8xf32> to vector<2x8xf32>
    %91 = vector.shape_cast %90 : vector<2x8xf32> to vector<2x8x1xf32>
    %92 = tpu.reciprocal %91 {approx = true} : vector<2x8x1xf32> -> vector<2x8x1xf32>
    %93 = vector.broadcast %92 : vector<2x8x1xf32> to vector<2x8x8xf32>
    %94 = arith.mulf %89, %93 : vector<2x8x8xf32>
    %c3 = arith.constant 3 : index
    %c0_33 = arith.constant 0 : index
    %c0_34 = arith.constant 0 : index
    %c0_35 = arith.constant 0 : index
    %95 = vector.load %arg13[%c3, %c0_33, %c0_34, %c0_35] : memref<4x2x8x8xf32, #tpu.memory_space<vmem>>, vector<1x2x8x8xf32>
    %96 = vector.shape_cast %95 : vector<1x2x8x8xf32> to vector<2x8x8xf32>
    %97 = vector.shape_cast %94 : vector<2x8x8xf32> to vector<1x2x8x8xf32>
    tpu.vector_store %arg13[%c3, %c0_33, %c0_34, %c0_35], %97 {strides = array<i32>} : memref<4x2x8x8xf32, #tpu.memory_space<vmem>>, vector<1x2x8x8xf32>,
    "tpu.trace_start"() <{level = 10 : i32, message = "bqk,bkd->bqd"}> : () -> ()
    %cst_36 = arith.constant dense<0.000000e+00> : vector<2x8x32xf32>
    %98 = tpu.matmul %94, %81, %cst_36 {dimension_numbers = #tpu.dot_dimension_numbers<[2], [1], [1], [2], [0, 0, 0, 1, 1, 2], [0], [0]>} : vector<2x8x8xf32>, vector<2x8x32xf32>, vector<2x8x32xf32> -> vector<2x8x32xf32>
    "tpu.trace_stop"() : () -> ()
    %99 = vector.shape_cast %98 : vector<2x8x32xf32> to vector<16x32xf32>
    %100 = tpu.concatenate %27, %51, %75, %99 in 1 : vector<16x32xf32>, vector<16x32xf32>, vector<16x32xf32>, vector<16x32xf32> -> vector<16x128xf32>
    %c0_37 = arith.constant 0 : index
    %c0_38 = arith.constant 0 : index
    %101 = vector.load %arg2[%c0_37, %c0_38] : memref<32x128xf32, #tpu.memory_space<vmem>>, vector<32x128xf32>
    %cst_39 = arith.constant dense<0.000000e+00> : vector<16x32xf32>
    %102 = tpu.matmul %100, %101, %cst_39 {dimension_numbers = #tpu.dot_dimension_numbers<[1], [1], [0], [0], [0, 0, 1, 0], [], []>} : vector<16x128xf32>, vector<32x128xf32>, vector<16x32xf32> -> vector<16x32xf32>
    %c0_40 = arith.constant 0 : index
    %c0_41 = arith.constant 0 : index
    %103 = vector.load %arg3[%c0_40, %c0_41] : memref<1x32xf32, #tpu.memory_space<vmem>>, vector<1x32xf32>
    %104 = vector.broadcast %103 : vector<1x32xf32> to vector<16x32xf32>
    %105 = arith.addf %102, %104 : vector<16x32xf32>
    %106 = arith.addf %105, %1 : vector<16x32xf32>
    %cst_42 = arith.constant dense<0.000000e+00> : vector<16xf32>
    %107 = vector.multi_reduction <add>, %106, %cst_42 [1] : vector<16x32xf32> to vector<16xf32>
    %108 = vector.shape_cast %107 : vector<16xf32> to vector<16x1xf32>
    %cst_43 = arith.constant 3.200000e+01 : f32
    %109 = vector.broadcast %cst_43 : f32 to vector<16x1xf32>
    %110 = arith.divf %108, %109 : vector<16x1xf32>
    %111 = vector.broadcast %110 : vector<16x1xf32> to vector<16x32xf32>
    %112 = arith.subf %106, %111 : vector<16x32xf32>
    %113 = arith.mulf %112, %112 : vector<16x32xf32>
    %cst_44 = arith.constant dense<0.000000e+00> : vector<16xf32>
    %114 = vector.multi_reduction <add>, %113, %cst_44 [1] : vector<16x32xf32> to vector<16xf32>
    %115 = vector.shape_cast %114 : vector<16xf32> to vector<16x1xf32>
    %cst_45 = arith.constant 3.200000e+01 : f32
    %116 = vector.broadcast %cst_45 : f32 to vector<16x1xf32>
    %117 = arith.divf %115, %116 : vector<16x1xf32>
    %cst_46 = arith.constant 9.99999974E-6 : f32
    %118 = vector.broadcast %cst_46 : f32 to vector<16x1xf32>
    %119 = arith.addf %117, %118 : vector<16x1xf32>
    %120 = math.rsqrt %119 : vector<16x1xf32>
    %121 = vector.broadcast %120 : vector<16x1xf32> to vector<16x32xf32>
    %122 = arith.mulf %112, %121 : vector<16x32xf32>
    %c0_47 = arith.constant 0 : index
    %c0_48 = arith.constant 0 : index
    %123 = vector.load %arg4[%c0_47, %c0_48] : memref<1x32xf32, #tpu.memory_space<vmem>>, vector<1x32xf32>
    %124 = vector.broadcast %123 : vector<1x32xf32> to vector<16x32xf32>
    %125 = arith.mulf %122, %124 : vector<16x32xf32>
    %c0_49 = arith.constant 0 : index
    %c0_50 = arith.constant 0 : index
    %126 = vector.load %arg5[%c0_49, %c0_50] : memref<1x32xf32, #tpu.memory_space<vmem>>, vector<1x32xf32>
    %127 = vector.broadcast %126 : vector<1x32xf32> to vector<16x32xf32>
    %128 = arith.addf %125, %127 : vector<16x32xf32>
    %c0_51 = arith.constant 0 : index
    %c0_52 = arith.constant 0 : index
    %129 = vector.load %arg6[%c0_51, %c0_52] : memref<64x32xf32, #tpu.memory_space<vmem>>, vector<64x32xf32>
    %cst_53 = arith.constant dense<0.000000e+00> : vector<16x64xf32>
    %130 = tpu.matmul %128, %129, %cst_53 {dimension_numbers = #tpu.dot_dimension_numbers<[1], [1], [0], [0], [0, 0, 1, 0], [], []>} : vector<16x32xf32>, vector<64x32xf32>, vector<16x64xf32> -> vector<16x64xf32>
    %c0_54 = arith.constant 0 : index
    %c0_55 = arith.constant 0 : index
    %131 = vector.load %arg7[%c0_54, %c0_55] : memref<1x64xf32, #tpu.memory_space<vmem>>, vector<1x64xf32>
    %132 = vector.broadcast %131 : vector<1x64xf32> to vector<16x64xf32>
    %133 = arith.addf %130, %132 : vector<16x64xf32>
    %cst_56 = arith.constant 0.000000e+00 : f32
    %134 = vector.broadcast %cst_56 : f32 to vector<16x64xf32>
    %135 = arith.maximumf %133, %134 : vector<16x64xf32>
    %c0_57 = arith.constant 0 : index
    %c0_58 = arith.constant 0 : index
    %136 = vector.load %arg8[%c0_57, %c0_58] : memref<32x64xf32, #tpu.memory_space<vmem>>, vector<32x64xf32>
    %cst_59 = arith.constant dense<0.000000e+00> : vector<16x32xf32>
    %137 = tpu.matmul %135, %136, %cst_59 {dimension_numbers = #tpu.dot_dimension_numbers<[1], [1], [0], [0], [0, 0, 1, 0], [], []>} : vector<16x64xf32>, vector<32x64xf32>, vector<16x32xf32> -> vector<16x32xf32>
    %c0_60 = arith.constant 0 : index
    %c0_61 = arith.constant 0 : index
    %138 = vector.load %arg9[%c0_60, %c0_61] : memref<1x32xf32, #tpu.memory_space<vmem>>, vector<1x32xf32>
    %139 = vector.broadcast %138 : vector<1x32xf32> to vector<16x32xf32>
    %140 = arith.addf %137, %139 : vector<16x32xf32>
    %141 = arith.addf %140, %128 : vector<16x32xf32>
    %cst_62 = arith.constant dense<0.000000e+00> : vector<16xf32>
    %142 = vector.multi_reduction <add>, %141, %cst_62 [1] : vector<16x32xf32> to vector<16xf32>
    %143 = vector.shape_cast %142 : vector<16xf32> to vector<16x1xf32>
    %cst_63 = arith.constant 3.200000e+01 : f32
    %144 = vector.broadcast %cst_63 : f32 to vector<16x1xf32>
    %145 = arith.divf %143, %144 : vector<16x1xf32>
    %146 = vector.broadcast %145 : vector<16x1xf32> to vector<16x32xf32>
    %147 = arith.subf %141, %146 : vector<16x32xf32>
    %148 = arith.mulf %147, %147 : vector<16x32xf32>
    %cst_64 = arith.constant dense<0.000000e+00> : vector<16xf32>
    %149 = vector.multi_reduction <add>, %148, %cst_64 [1] : vector<16x32xf32> to vector<16xf32>
    %150 = vector.shape_cast %149 : vector<16xf32> to vector<16x1xf32>
    %cst_65 = arith.constant 3.200000e+01 : f32
    %151 = vector.broadcast %cst_65 : f32 to vector<16x1xf32>
    %152 = arith.divf %150, %151 : vector<16x1xf32>
    %cst_66 = arith.constant 9.99999974E-6 : f32
    %153 = vector.broadcast %cst_66 : f32 to vector<16x1xf32>
    %154 = arith.addf %152, %153 : vector<16x1xf32>
    %155 = math.rsqrt %154 : vector<16x1xf32>
    %156 = vector.broadcast %155 : vector<16x1xf32> to vector<16x32xf32>
    %157 = arith.mulf %147, %156 : vector<16x32xf32>
    %c0_67 = arith.constant 0 : index
    %c0_68 = arith.constant 0 : index
    %158 = vector.load %arg10[%c0_67, %c0_68] : memref<1x32xf32, #tpu.memory_space<vmem>>, vector<1x32xf32>
    %159 = vector.broadcast %158 : vector<1x32xf32> to vector<16x32xf32>
    %160 = arith.mulf %157, %159 : vector<16x32xf32>
    %c0_69 = arith.constant 0 : index
    %c0_70 = arith.constant 0 : index
    %161 = vector.load %arg11[%c0_69, %c0_70] : memref<1x32xf32, #tpu.memory_space<vmem>>, vector<1x32xf32>
    %162 = vector.broadcast %161 : vector<1x32xf32> to vector<16x32xf32>
    %163 = arith.addf %160, %162 : vector<16x32xf32>
    %164 = vector.shape_cast %163 : vector<16x32xf32> to vector<2x8x32xf32>
    %c0_71 = arith.constant 0 : index
    %c0_72 = arith.constant 0 : index
    %c0_73 = arith.constant 0 : index
    %165 = vector.load %arg12[%c0_71, %c0_72, %c0_73] : memref<2x8x32xf32, #tpu.memory_space<vmem>>, vector<2x8x32xf32>
    tpu.vector_store %arg12[%c0_71, %c0_72, %c0_73], %164 {strides = array<i32>} : memref<2x8x32xf32, #tpu.memory_space<vmem>>, vector<2x8x32xf32>,
    return
  }
}

</mosaic_0001>

<llo_original>
// kernel: transformer_unit_pallas.1
$region0: #{transformer_unit_pallas.1}
  #allocation0 [shape = 'u32[]', space=smem, size = 0x4, offset = 0x4, fixed_abs, tag = 'smem constant byte address 0x4 - core index']
  #allocation1 [shape = 'u32[144,128]{1,0:T(1,128)}', space=vmem, size = 0x12000, scoped, tag = 'internal scratch']
  %s0 = inlined_call_operand.vmem [shape: f32[2,8,32], index: 0, kind: input, shape index: {}]
  %s1 = inlined_call_operand.vmem [shape: f32[384,32], index: 1, kind: input, shape index: {}]
  %s2 = inlined_call_operand.vmem [shape: f32[32,128], index: 2, kind: input, shape index: {}]
  %s3 = inlined_call_operand.vmem [shape: f32[1,32], index: 3, kind: input, shape index: {}]
  %s4 = inlined_call_operand.vmem [shape: f32[1,32], index: 4, kind: input, shape index: {}]
  %s5 = inlined_call_operand.vmem [shape: f32[1,32], index: 5, kind: input, shape index: {}]
  %s6 = inlined_call_operand.vmem [shape: f32[64,32], index: 6, kind: input, shape index: {}]
  %s7 = inlined_call_operand.vmem [shape: f32[1,64], index: 7, kind: input, shape index: {}]
  %s8 = inlined_call_operand.vmem [shape: f32[32,64], index: 8, kind: input, shape index: {}]
  %s9 = inlined_call_operand.vmem [shape: f32[1,32], index: 9, kind: input, shape index: {}]
  %s10 = inlined_call_operand.vmem [shape: f32[1,32], index: 10, kind: input, shape index: {}]
  %s11 = inlined_call_operand.vmem [shape: f32[1,32], index: 11, kind: input, shape index: {}]
  %s12 = inlined_call_operand.hbm [shape: f32[2,8,32], index: 12, kind: output, shape index: {0}]
  %s13 = inlined_call_operand.vmem [shape: f32[4,2,8,8], index: 13, kind: output, shape index: {1}]
  %14 = xla_tuple %s12, %s13
  %s15 = sld [smem:[#allocation0]]
  $region66: #{transformer_unit_pallas.1} parent=0
    _
  %s17 = ssub.s32 1, %s15
  %s18 = scalar_select 0, %s17, %s15
  $region1: #{transformer_unit_pallas.1} parent=0
    #allocation2 [shape = 'u8[8192]{0}', space=vmem, size = 0x2000, scoped, tag = 'output window, operand 0, single buffered']
    #allocation3 [shape = 's32[1]{0}', space=sflag, size = 0x4, scoped, tag = 'scoped memory for transformer_unit_pallas.1']
    %19 = vsyncpa [#allocation3], 0
    // Predicated region
    $region2: #{transformer_unit_pallas.1} parent=1 // pred_check
      _
    $region3: #{transformer_unit_pallas.1} parent=1 // pred_check_branch
      %21 = sbr.rel (0) target = $region5
    $region4: #{transformer_unit_pallas.1} parent=1 // pred_region
      _
    $region5: #{transformer_unit_pallas.1} parent=1 // pred_fallthru
      _
    // Predicated region
    $region6: #{transformer_unit_pallas.1} parent=1 // pred_check
      _
    $region7: #{transformer_unit_pallas.1} parent=1 // pred_check_branch
      %23 = sbr.rel (0) target = $region9
    $region8: #{transformer_unit_pallas.1} parent=1 // pred_region
      _
    $region9: #{transformer_unit_pallas.1} parent=1 // pred_fallthru
      _
    // Predicated region
    $region10: #{transformer_unit_pallas.1} parent=1 // pred_check
      _
    $region11: #{transformer_unit_pallas.1} parent=1 // pred_check_branch
      %25 = sbr.rel (0) target = $region13
    $region12: #{transformer_unit_pallas.1} parent=1 // pred_region
      _
    $region13: #{transformer_unit_pallas.1} parent=1 // pred_fallthru
      _
    // Predicated region
    $region14: #{transformer_unit_pallas.1} parent=1 // pred_check
      _
    $region15: #{transformer_unit_pallas.1} parent=1 // pred_check_branch
      %27 = sbr.rel (0) target = $region17
    $region16: #{transformer_unit_pallas.1} parent=1 // pred_region
      _
    $region17: #{transformer_unit_pallas.1} parent=1 // pred_fallthru
      _
    // Predicated region
    $region18: #{transformer_unit_pallas.1} parent=1 // pred_check
      _
    $region19: #{transformer_unit_pallas.1} parent=1 // pred_check_branch
      %29 = sbr.rel (0) target = $region21
    $region20: #{transformer_unit_pallas.1} parent=1 // pred_region
      _
    $region21: #{transformer_unit_pallas.1} parent=1 // pred_fallthru
      _
    // Predicated region
    $region22: #{transformer_unit_pallas.1} parent=1 // pred_check
      _
    $region23: #{transformer_unit_pallas.1} parent=1 // pred_check_branch
      %31 = sbr.rel (0) target = $region25
    $region24: #{transformer_unit_pallas.1} parent=1 // pred_region
      _
    $region25: #{transformer_unit_pallas.1} parent=1 // pred_fallthru
      _
    // Predicated region
    $region26: #{transformer_unit_pallas.1} parent=1 // pred_check
      _
    $region27: #{transformer_unit_pallas.1} parent=1 // pred_check_branch
      %33 = sbr.rel (0) target = $region29
    $region28: #{transformer_unit_pallas.1} parent=1 // pred_region
      _
    $region29: #{transformer_unit_pallas.1} parent=1 // pred_fallthru
      _
    // Predicated region
    $region30: #{transformer_unit_pallas.1} parent=1 // pred_check
      _
    $region31: #{transformer_unit_pallas.1} parent=1 // pred_check_branch
      %35 = sbr.rel (0) target = $region33
    $region32: #{transformer_unit_pallas.1} parent=1 // pred_region
      _
    $region33: #{transformer_unit_pallas.1} parent=1 // pred_fallthru
      _
    // Predicated region
    $region34: #{transformer_unit_pallas.1} parent=1 // pred_check
      _
    $region35: #{transformer_unit_pallas.1} parent=1 // pred_check_branch
      %37 = sbr.rel (0) target = $region37
    $region36: #{transformer_unit_pallas.1} parent=1 // pred_region
      _
    $region37: #{transformer_unit_pallas.1} parent=1 // pred_fallthru
      _
    // Predicated region
    $region38: #{transformer_unit_pallas.1} parent=1 // pred_check
      _
    $region39: #{transformer_unit_pallas.1} parent=1 // pred_check_branch
      %39 = sbr.rel (0) target = $region41
    $region40: #{transformer_unit_pallas.1} parent=1 // pred_region
      _
    $region41: #{transformer_unit_pallas.1} parent=1 // pred_fallthru
      _
    // Predicated region
    $region42: #{transformer_unit_pallas.1} parent=1 // pred_check
      _
    $region43: #{transformer_unit_pallas.1} parent=1 // pred_check_branch
      %41 = sbr.rel (0) target = $region45
    $region44: #{transformer_unit_pallas.1} parent=1 // pred_region
      _
    $region45: #{transformer_unit_pallas.1} parent=1 // pred_fallthru
      _
    // Predicated region
    $region46: #{transformer_unit_pallas.1} parent=1 // pred_check
      _
    $region47: #{transformer_unit_pallas.1} parent=1 // pred_check_branch
      %43 = sbr.rel (0) target = $region49
    $region48: #{transformer_unit_pallas.1} parent=1 // pred_region
      _
    $region49: #{transformer_unit_pallas.1} parent=1 // pred_fallthru
      _
    %v44 = vld [vmem:[%s0] sm:$0xff]
    %v45 = vld [vmem:[%s0 + $0x8] sm:$0xff]
    %v46 = vld [vmem:[%s1] sm:$0xff]
    %v47 = vld [vmem:[%s1 + $0x8] sm:$0xff]
    %v48 = vld [vmem:[%s1 + $0x10] sm:$0xff]
    %v49 = vld [vmem:[%s1 + $0x18] sm:$0xff]
    %v50 = vld [vmem:[%s1 + $0x20] sm:$0xff]
    %v51 = vld [vmem:[%s1 + $0x28] sm:$0xff]
    %v52 = vld [vmem:[%s1 + $0x30] sm:$0xff]
    %v53 = vld [vmem:[%s1 + $0x38] sm:$0xff]
    %v54 = vld [vmem:[%s1 + $0x40] sm:$0xff]
    %v55 = vld [vmem:[%s1 + $0x48] sm:$0xff]
    %v56 = vld [vmem:[%s1 + $0x50] sm:$0xff]
    %v57 = vld [vmem:[%s1 + $0x58] sm:$0xff]
    %v58 = vld [vmem:[%s1 + $0x60] sm:$0xff]
    %v59 = vld [vmem:[%s1 + $0x68] sm:$0xff]
    %v60 = vld [vmem:[%s1 + $0x70] sm:$0xff]
    %v61 = vld [vmem:[%s1 + $0x78] sm:$0xff]
    %v62 = vld [vmem:[%s1 + $0x80] sm:$0xff]
    %v63 = vld [vmem:[%s1 + $0x88] sm:$0xff]
    %v64 = vld [vmem:[%s1 + $0x90] sm:$0xff]
    %v65 = vld [vmem:[%s1 + $0x98] sm:$0xff]
    %v66 = vld [vmem:[%s1 + $0xa0] sm:$0xff]
    %v67 = vld [vmem:[%s1 + $0xa8] sm:$0xff]
    %v68 = vld [vmem:[%s1 + $0xb0] sm:$0xff]
    %v69 = vld [vmem:[%s1 + $0xb8] sm:$0xff]
    %v70 = vld [vmem:[%s1 + $0xc0] sm:$0xff]
    %v71 = vld [vmem:[%s1 + $0xc8] sm:$0xff]
    %v72 = vld [vmem:[%s1 + $0xd0] sm:$0xff]
    %v73 = vld [vmem:[%s1 + $0xd8] sm:$0xff]
    %v74 = vld [vmem:[%s1 + $0xe0] sm:$0xff]
    %v75 = vld [vmem:[%s1 + $0xe8] sm:$0xff]
    %v76 = vld [vmem:[%s1 + $0xf0] sm:$0xff]
    %v77 = vld [vmem:[%s1 + $0xf8] sm:$0xff]
    %v78 = vld [vmem:[%s1 + $0x100] sm:$0xff]
    %v79 = vld [vmem:[%s1 + $0x108] sm:$0xff]
    %v80 = vld [vmem:[%s1 + $0x110] sm:$0xff]
    %v81 = vld [vmem:[%s1 + $0x118] sm:$0xff]
    %v82 = vld [vmem:[%s1 + $0x120] sm:$0xff]
    %v83 = vld [vmem:[%s1 + $0x128] sm:$0xff]
    %v84 = vld [vmem:[%s1 + $0x130] sm:$0xff]
    %v85 = vld [vmem:[%s1 + $0x138] sm:$0xff]
    %v86 = vld [vmem:[%s1 + $0x140] sm:$0xff]
    %v87 = vld [vmem:[%s1 + $0x148] sm:$0xff]
    %v88 = vld [vmem:[%s1 + $0x150] sm:$0xff]
    %v89 = vld [vmem:[%s1 + $0x158] sm:$0xff]
    %v90 = vld [vmem:[%s1 + $0x160] sm:$0xff]
    %v91 = vld [vmem:[%s1 + $0x168] sm:$0xff]
    %v92 = vld [vmem:[%s1 + $0x170] sm:$0xff]
    %v93 = vld [vmem:[%s1 + $0x178] sm:$0xff]
    %vm94 = vcmask 261120
    %v96 = vsel %vm94, %v44, 0
    %v99 = vsel %vm94, %v45, 0
    %v102 = vsel %vm94, %v46, 0
    %v105 = vsel %vm94, %v47, 0
    %v108 = vsel %vm94, %v48, 0
    %v111 = vsel %vm94, %v49, 0
    %v114 = vsel %vm94, %v50, 0
    %v117 = vsel %vm94, %v51, 0
    %v120 = vsel %vm94, %v52, 0
    %v123 = vsel %vm94, %v53, 0
    %v126 = vsel %vm94, %v54, 0
    %v129 = vsel %vm94, %v55, 0
    %v132 = vsel %vm94, %v56, 0
    %v135 = vsel %vm94, %v57, 0
    %v138 = vsel %vm94, %v58, 0
    %v141 = vsel %vm94, %v59, 0
    %v144 = vsel %vm94, %v60, 0
    %v147 = vsel %vm94, %v61, 0
    %v150 = vsel %vm94, %v62, 0
    %v153 = vsel %vm94, %v63, 0
    %v156 = vsel %vm94, %v64, 0
    %v159 = vsel %vm94, %v65, 0
    %v162 = vsel %vm94, %v66, 0
    %v165 = vsel %vm94, %v67, 0
    %v168 = vsel %vm94, %v68, 0
    %v171 = vsel %vm94, %v69, 0
    %v174 = vsel %vm94, %v70, 0
    %v177 = vsel %vm94, %v71, 0
    %v180 = vsel %vm94, %v72, 0
    %v183 = vsel %vm94, %v73, 0
    %v186 = vsel %vm94, %v74, 0
    %v189 = vsel %vm94, %v75, 0
    %v192 = vsel %vm94, %v76, 0
    %v195 = vsel %vm94, %v77, 0
    %v198 = vsel %vm94, %v78, 0
    %v201 = vsel %vm94, %v79, 0
    %v204 = vsel %vm94, %v80, 0
    %v207 = vsel %vm94, %v81, 0
    %v210 = vsel %vm94, %v82, 0
    %v213 = vsel %vm94, %v83, 0
    %v216 = vsel %vm94, %v84, 0
    %v219 = vsel %vm94, %v85, 0
    %v222 = vsel %vm94, %v86, 0
    %v225 = vsel %vm94, %v87, 0
    %v228 = vsel %vm94, %v88, 0
    %v231 = vsel %vm94, %v89, 0
    %v234 = vsel %vm94, %v90, 0
    %v237 = vsel %vm94, %v91, 0
    %v240 = vsel %vm94, %v92, 0
    %v243 = vsel %vm94, %v93, 0
    %245 = vmatprep.subr.mxu0 0.0
    %246 = vmatpush1.xpose.msra.mxu0 %v147
    %247 = vmatprep.subr.mxu0 0.0
    %248 = vmatpush1.xpose.msra.mxu0 %v144
    %249 = vmatprep.subr.mxu0 0.0
    %250 = vmatpush1.xpose.msra.mxu0 %v141
    %251 = vmatprep.subr.mxu0 0.0
    %252 = vmatpush1.xpose.msra.mxu0 %v138
    %253 = vmatprep.subr.mxu0 0.0
    %254 = vmatpush1.xpose.msra.mxu0 %v135
    %255 = vmatprep.subr.mxu0 0.0
    %256 = vmatpush1.xpose.msra.mxu0 %v132
    %257 = vmatprep.subr.mxu0 0.0
    %258 = vmatpush1.xpose.msra.mxu0 %v129
    %259 = vmatprep.subr.mxu0 0.0
    %260 = vmatpush1.xpose.msra.mxu0 %v126
    %261 = vmatprep.subr.mxu0 0.0
    %262 = vmatpush1.xpose.msra.mxu0 %v123
    %263 = vmatprep.subr.mxu0 0.0
    %264 = vmatpush1.xpose.msra.mxu0 %v120
    %265 = vmatprep.subr.mxu0 0.0
    %266 = vmatpush1.xpose.msra.mxu0 %v117
    %267 = vmatprep.subr.mxu0 0.0
    %268 = vmatpush1.xpose.msra.mxu0 %v114
    %269 = vmatprep.subr.mxu0 0.0
    %270 = vmatpush1.xpose.msra.mxu0 %v111
    %271 = vmatprep.subr.mxu0 0.0
    %272 = vmatpush1.xpose.msra.mxu0 %v108
    %273 = vmatprep.subr.mxu0 0.0
    %274 = vmatpush1.xpose.msra.mxu0 %v105
    %275 = vmatprep.subr.mxu0 0.0
    %276 = vmatpush1.xpose.msra.mxu0 %v102
    %277 = vmatprep.subr.mxu0 0.0
    %278 = vmatpush2.xpose.msra.mxu0 %v195
    %279 = vmatprep.subr.mxu0 0.0
    %280 = vmatpush2.xpose.msra.mxu0 %v192
    %281 = vmatprep.subr.mxu0 0.0
    %282 = vmatpush2.xpose.msra.mxu0 %v189
    %283 = vmatprep.subr.mxu0 0.0
    %284 = vmatpush2.xpose.msra.mxu0 %v186
    %285 = vmatprep.subr.mxu0 0.0
    %286 = vmatpush2.xpose.msra.mxu0 %v183
    %287 = vmatprep.subr.mxu0 0.0
    %288 = vmatpush2.xpose.msra.mxu0 %v180
    %289 = vmatprep.subr.mxu0 0.0
    %290 = vmatpush2.xpose.msra.mxu0 %v177
    %291 = vmatprep.subr.mxu0 0.0
    %292 = vmatpush2.xpose.msra.mxu0 %v174
    %293 = vmatprep.subr.mxu0 0.0
    %294 = vmatpush2.xpose.msra.mxu0 %v171
    %295 = vmatprep.subr.mxu0 0.0
    %296 = vmatpush2.xpose.msra.mxu0 %v168
    %297 = vmatprep.subr.mxu0 0.0
    %298 = vmatpush2.xpose.msra.mxu0 %v165
    %299 = vmatprep.subr.mxu0 0.0
    %300 = vmatpush2.xpose.msra.mxu0 %v162
    %301 = vmatprep.subr.mxu0 0.0
    %302 = vmatpush2.xpose.msra.mxu0 %v159
    %303 = vmatprep.subr.mxu0 0.0
    %304 = vmatpush2.xpose.msra.mxu0 %v156
    %305 = vmatprep.subr.mxu0 0.0
    %306 = vmatpush2.xpose.msra.mxu0 %v153
    %307 = vmatprep.subr.mxu0 0.0
    %308 = vmatpush2.xpose.msra.mxu0 %v150
    %309 = vmatprep.mubr.f32.mxu0 0.0
    %310 = vmatmul.mubr.f32.gmra.mxu0 %v96
    %v311 = vpop.f32.mrf.mxu0
    %v312 = vadd.f32 0.0, %v311
    %v313 = vpop.f32.mrf.mxu0
    %v314 = vadd.f32 0.0, %v313
    %315 = vmatprep.mubr.f32.mxu0 0.0
    %316 = vmatmul.mubr.f32.gmra.mxu0 %v99
    %v317 = vpop.f32.mrf.mxu0
    %v318 = vadd.f32 0.0, %v317
    %v319 = vpop.f32.mrf.mxu0
    %v320 = vadd.f32 0.0, %v319
    %321 = vdwg.mxu0
    %322 = vmatprep.subr.mxu0 0.0
    %323 = vmatpush1.xpose.msra.mxu0 %v243
    %324 = vmatprep.subr.mxu0 0.0
    %325 = vmatpush1.xpose.msra.mxu0 %v240
    %326 = vmatprep.subr.mxu0 0.0
    %327 = vmatpush1.xpose.msra.mxu0 %v237
    %328 = vmatprep.subr.mxu0 0.0
    %329 = vmatpush1.xpose.msra.mxu0 %v234
    %330 = vmatprep.subr.mxu0 0.0
    %331 = vmatpush1.xpose.msra.mxu0 %v231
    %332 = vmatprep.subr.mxu0 0.0
    %333 = vmatpush1.xpose.msra.mxu0 %v228
    %334 = vmatprep.subr.mxu0 0.0
    %335 = vmatpush1.xpose.msra.mxu0 %v225
    %336 = vmatprep.subr.mxu0 0.0
    %337 = vmatpush1.xpose.msra.mxu0 %v222
    %338 = vmatprep.subr.mxu0 0.0
    %339 = vmatpush1.xpose.msra.mxu0 %v219
    %340 = vmatprep.subr.mxu0 0.0
    %341 = vmatpush1.xpose.msra.mxu0 %v216
    %342 = vmatprep.subr.mxu0 0.0
    %343 = vmatpush1.xpose.msra.mxu0 %v213
    %344 = vmatprep.subr.mxu0 0.0
    %345 = vmatpush1.xpose.msra.mxu0 %v210
    %346 = vmatprep.subr.mxu0 0.0
    %347 = vmatpush1.xpose.msra.mxu0 %v207
    %348 = vmatprep.subr.mxu0 0.0
    %349 = vmatpush1.xpose.msra.mxu0 %v204
    %350 = vmatprep.subr.mxu0 0.0
    %351 = vmatpush1.xpose.msra.mxu0 %v201
    %352 = vmatprep.subr.mxu0 0.0
    %353 = vmatpush1.xpose.msra.mxu0 %v198
    %354 = vmatprep.subr.mxu0 0.0
    %355 = vmatpush2.xpose.msra.mxu0 0.0
    %356 = vmatprep.subr.mxu0 0.0
    %357 = vmatpush2.xpose.msra.mxu0 0.0
    %358 = vmatprep.subr.mxu0 0.0
    %359 = vmatpush2.xpose.msra.mxu0 0.0
    %360 = vmatprep.subr.mxu0 0.0
    %361 = vmatpush2.xpose.msra.mxu0 0.0
    %362 = vmatprep.subr.mxu0 0.0
    %363 = vmatpush2.xpose.msra.mxu0 0.0
    %364 = vmatprep.subr.mxu0 0.0
    %365 = vmatpush2.xpose.msra.mxu0 0.0
    %366 = vmatprep.subr.mxu0 0.0
    %367 = vmatpush2.xpose.msra.mxu0 0.0
    %368 = vmatprep.subr.mxu0 0.0
    %369 = vmatpush2.xpose.msra.mxu0 0.0
    %370 = vmatprep.subr.mxu0 0.0
    %371 = vmatpush2.xpose.msra.mxu0 0.0
    %372 = vmatprep.subr.mxu0 0.0
    %373 = vmatpush2.xpose.msra.mxu0 0.0
    %374 = vmatprep.subr.mxu0 0.0
    %375 = vmatpush2.xpose.msra.mxu0 0.0
    %376 = vmatprep.subr.mxu0 0.0
    %377 = vmatpush2.xpose.msra.mxu0 0.0
    %378 = vmatprep.subr.mxu0 0.0
    %379 = vmatpush2.xpose.msra.mxu0 0.0
    %380 = vmatprep.subr.mxu0 0.0
    %381 = vmatpush2.xpose.msra.mxu0 0.0
    %382 = vmatprep.subr.mxu0 0.0
    %383 = vmatpush2.xpose.msra.mxu0 0.0
    %384 = vmatprep.subr.mxu0 0.0
    %385 = vmatpush2.xpose.msra.mxu0 0.0
    %386 = vmatprep.mubr.f32.mxu0 0.0
    %387 = vmatmul.mubr.f32.gmra.mxu0 %v96
    %v388 = vpop.f32.mrf.mxu0
    %v389 = vadd.f32 0.0, %v388
    %v390 = vpop.f32.mrf.mxu0
    %391 = vmatprep.mubr.f32.mxu0 0.0
    %392 = vmatmul.mubr.f32.gmra.mxu0 %v99
    %v393 = vpop.f32.mrf.mxu0
    %v394 = vadd.f32 0.0, %v393
    %v395 = vpop.f32.mrf.mxu0
    %396 = vdwg.mxu0
    %v398 = vsel %vm94, %v312, 0
    %v401 = vsel %vm94, %v314, 0
    %403 = vmatprep.subr.mxu0 0.0
    %404 = vmatpush1.xpose.msra.mxu0 0.0
    %405 = vmatprep.subr.mxu0 0.0
    %406 = vmatpush1.xpose.msra.mxu0 0.0
    %407 = vmatprep.subr.mxu0 0.0
    %408 = vmatpush1.xpose.msra.mxu0 0.0
    %409 = vmatprep.subr.mxu0 0.0
    %410 = vmatpush1.xpose.msra.mxu0 0.0
    %411 = vmatprep.subr.mxu0 0.0
    %412 = vmatpush1.xpose.msra.mxu0 0.0
    %413 = vmatprep.subr.mxu0 0.0
    %414 = vmatpush1.xpose.msra.mxu0 0.0
    %415 = vmatprep.subr.mxu0 0.0
    %416 = vmatpush1.xpose.msra.mxu0 0.0
    %417 = vmatprep.subr.mxu0 0.0
    %418 = vmatpush1.xpose.msra.mxu0 0.0
    %419 = vmatprep.subr.mxu0 0.0
    %420 = vmatpush1.xpose.msra.mxu0 0.0
    %421 = vmatprep.subr.mxu0 0.0
    %422 = vmatpush1.xpose.msra.mxu0 0.0
    %423 = vmatprep.subr.mxu0 0.0
    %424 = vmatpush1.xpose.msra.mxu0 0.0
    %425 = vmatprep.subr.mxu0 0.0
    %426 = vmatpush1.xpose.msra.mxu0 0.0
    %427 = vmatprep.subr.mxu0 0.0
    %428 = vmatpush1.xpose.msra.mxu0 0.0
    %429 = vmatprep.subr.mxu0 0.0
    %430 = vmatpush1.xpose.msra.mxu0 0.0
    %431 = vmatprep.subr.mxu0 0.0
    %432 = vmatpush1.xpose.msra.mxu0 0.0
    %433 = vmatprep.subr.mxu0 0.0
    %434 = vmatpush1.xpose.msra.mxu0 %v401
    %435 = vmatprep.subr.mxu0 0.0
    %436 = vmatpush2.xpose.msra.mxu0 0.0
    %437 = vmatprep.subr.mxu0 0.0
    %438 = vmatpush2.xpose.msra.mxu0 0.0
    %439 = vmatprep.subr.mxu0 0.0
    %440 = vmatpush2.xpose.msra.mxu0 0.0
    %441 = vmatprep.subr.mxu0 0.0
    %442 = vmatpush2.xpose.msra.mxu0 0.0
    %443 = vmatprep.subr.mxu0 0.0
    %444 = vmatpush2.xpose.msra.mxu0 0.0
    %445 = vmatprep.subr.mxu0 0.0
    %446 = vmatpush2.xpose.msra.mxu0 0.0
    %447 = vmatprep.subr.mxu0 0.0
    %448 = vmatpush2.xpose.msra.mxu0 0.0
    %449 = vmatprep.subr.mxu0 0.0
    %450 = vmatpush2.xpose.msra.mxu0 0.0
    %451 = vmatprep.subr.mxu0 0.0
    %452 = vmatpush2.xpose.msra.mxu0 0.0
    %453 = vmatprep.subr.mxu0 0.0
    %454 = vmatpush2.xpose.msra.mxu0 0.0
    %455 = vmatprep.subr.mxu0 0.0
    %456 = vmatpush2.xpose.msra.mxu0 0.0
    %457 = vmatprep.subr.mxu0 0.0
    %458 = vmatpush2.xpose.msra.mxu0 0.0
    %459 = vmatprep.subr.mxu0 0.0
    %460 = vmatpush2.xpose.msra.mxu0 0.0
    %461 = vmatprep.subr.mxu0 0.0
    %462 = vmatpush2.xpose.msra.mxu0 0.0
    %463 = vmatprep.subr.mxu0 0.0
    %464 = vmatpush2.xpose.msra.mxu0 0.0
    %465 = vmatprep.subr.mxu0 0.0
    %466 = vmatpush2.xpose.msra.mxu0 0.0
    %467 = vmatprep.mubr.f32.mxu0 0.0
    %468 = vmatmul.mubr.f32.gmra.mxu0 %v398
    %v469 = vpop.f32.mrf.mxu0
    %v470 = vadd.f32 0.0, %v469
    %v471 = vpop.f32.mrf.mxu0
    %472 = vdwg.mxu0
    %v474 = vsel %vm94, %v318, 0
    %v477 = vsel %vm94, %v320, 0
    %479 = vmatprep.subr.mxu0 0.0
    %480 = vmatpush1.xpose.msra.mxu0 0.0
    %481 = vmatprep.subr.mxu0 0.0
    %482 = vmatpush1.xpose.msra.mxu0 0.0
    %483 = vmatprep.subr.mxu0 0.0
    %484 = vmatpush1.xpose.msra.mxu0 0.0
    %485 = vmatprep.subr.mxu0 0.0
    %486 = vmatpush1.xpose.msra.mxu0 0.0
    %487 = vmatprep.subr.mxu0 0.0
    %488 = vmatpush1.xpose.msra.mxu0 0.0
    %489 = vmatprep.subr.mxu0 0.0
    %490 = vmatpush1.xpose.msra.mxu0 0.0
    %491 = vmatprep.subr.mxu0 0.0
    %492 = vmatpush1.xpose.msra.mxu0 0.0
    %493 = vmatprep.subr.mxu0 0.0
    %494 = vmatpush1.xpose.msra.mxu0 0.0
    %495 = vmatprep.subr.mxu0 0.0
    %496 = vmatpush1.xpose.msra.mxu0 0.0
    %497 = vmatprep.subr.mxu0 0.0
    %498 = vmatpush1.xpose.msra.mxu0 0.0
    %499 = vmatprep.subr.mxu0 0.0
    %500 = vmatpush1.xpose.msra.mxu0 0.0
    %501 = vmatprep.subr.mxu0 0.0
    %502 = vmatpush1.xpose.msra.mxu0 0.0
    %503 = vmatprep.subr.mxu0 0.0
    %504 = vmatpush1.xpose.msra.mxu0 0.0
    %505 = vmatprep.subr.mxu0 0.0
    %506 = vmatpush1.xpose.msra.mxu0 0.0
    %507 = vmatprep.subr.mxu0 0.0
    %508 = vmatpush1.xpose.msra.mxu0 0.0
    %509 = vmatprep.subr.mxu0 0.0
    %510 = vmatpush1.xpose.msra.mxu0 %v477
    %511 = vmatprep.subr.mxu0 0.0
    %512 = vmatpush2.xpose.msra.mxu0 0.0
    %513 = vmatprep.subr.mxu0 0.0
    %514 = vmatpush2.xpose.msra.mxu0 0.0
    %515 = vmatprep.subr.mxu0 0.0
    %516 = vmatpush2.xpose.msra.mxu0 0.0
    %517 = vmatprep.subr.mxu0 0.0
    %518 = vmatpush2.xpose.msra.mxu0 0.0
    %519 = vmatprep.subr.mxu0 0.0
    %520 = vmatpush2.xpose.msra.mxu0 0.0
    %521 = vmatprep.subr.mxu0 0.0
    %522 = vmatpush2.xpose.msra.mxu0 0.0
    %523 = vmatprep.subr.mxu0 0.0
    %524 = vmatpush2.xpose.msra.mxu0 0.0
    %525 = vmatprep.subr.mxu0 0.0
    %526 = vmatpush2.xpose.msra.mxu0 0.0
    %527 = vmatprep.subr.mxu0 0.0
    %528 = vmatpush2.xpose.msra.mxu0 0.0
    %529 = vmatprep.subr.mxu0 0.0
    %530 = vmatpush2.xpose.msra.mxu0 0.0
    %531 = vmatprep.subr.mxu0 0.0
    %532 = vmatpush2.xpose.msra.mxu0 0.0
    %533 = vmatprep.subr.mxu0 0.0
    %534 = vmatpush2.xpose.msra.mxu0 0.0
    %535 = vmatprep.subr.mxu0 0.0
    %536 = vmatpush2.xpose.msra.mxu0 0.0
    %537 = vmatprep.subr.mxu0 0.0
    %538 = vmatpush2.xpose.msra.mxu0 0.0
    %539 = vmatprep.subr.mxu0 0.0
    %540 = vmatpush2.xpose.msra.mxu0 0.0
    %541 = vmatprep.subr.mxu0 0.0
    %542 = vmatpush2.xpose.msra.mxu0 0.0
    %543 = vmatprep.mubr.f32.mxu0 0.0
    %544 = vmatmul.mubr.f32.gmra.mxu0 %v474
    %v545 = vpop.f32.mrf.mxu0
    %v546 = vadd.f32 0.0, %v545
    %v547 = vpop.f32.mrf.mxu0
    %548 = vdwg.mxu0
    %v549 = vmul.f32 %v470, 0.17677669
    %v550 = vmul.f32 %v546, 0.17677669
    %vm551 = vcmask 64512
    %v552 = vsel %vm551, %v549, -inf
    %553 = vmax.xlane.f32.xlu0 %v552
    %v554 = vpop.xlane.xlu0 %553
    %v555 = vsel %vm551, %v550, -inf
    %556 = vmax.xlane.f32.xlu0 %v555
    %v557 = vpop.xlane.xlu0 %556
    %v558 = vsub.f32 %v549, %v554
    %v559 = vsub.f32 %v550, %v557
    %v560 = vmul.f32 %v558, 1.442695
    %v561 = vpow.pop %v560
    %v562 = vmul.f32 %v559, 1.442695
    %v563 = vpow.pop %v562
    %v564 = vsel %vm551, %v561, 0.0
    %565 = vadd.xlane.f32.xlu0 %v564
    %v566 = vpop.xlane.xlu0 %565
    %v567 = vsel %vm551, %v563, 0.0
    %568 = vadd.xlane.f32.xlu0 %v567
    %v569 = vpop.xlane.xlu0 %568
    %v570 = vrcp.pop %v566
    %v571 = vrcp.pop %v569
    %v572 = vmul.f32 %v561, %v570
    %v573 = vmul.f32 %v563, %v571
    %574 = vst.msk [vmem:[%s13] sm:$0xff] %vm551, %v572
    %575 = vst.msk [vmem:[%s13 + $0x8] sm:$0xff] %vm551, %v573
    %v577 = vsel %vm551, %v572, 0
    %579 = vmatprep.subr.mxu0 0.0
    %580 = vmatpush1.msra.mxu0 0.0
    %581 = vmatprep.subr.mxu0 0.0
    %582 = vmatpush1.msra.mxu0 0.0
    %583 = vmatprep.subr.mxu0 0.0
    %584 = vmatpush1.msra.mxu0 0.0
    %585 = vmatprep.subr.mxu0 0.0
    %586 = vmatpush1.msra.mxu0 0.0
    %587 = vmatprep.subr.mxu0 0.0
    %588 = vmatpush1.msra.mxu0 0.0
    %589 = vmatprep.subr.mxu0 0.0
    %590 = vmatpush1.msra.mxu0 0.0
    %591 = vmatprep.subr.mxu0 0.0
    %592 = vmatpush1.msra.mxu0 0.0
    %593 = vmatprep.subr.mxu0 0.0
    %594 = vmatpush1.msra.mxu0 0.0
    %595 = vmatprep.subr.mxu0 0.0
    %596 = vmatpush1.msra.mxu0 0.0
    %597 = vmatprep.subr.mxu0 0.0
    %598 = vmatpush1.msra.mxu0 0.0
    %599 = vmatprep.subr.mxu0 0.0
    %600 = vmatpush1.msra.mxu0 0.0
    %601 = vmatprep.subr.mxu0 0.0
    %602 = vmatpush1.msra.mxu0 0.0
    %603 = vmatprep.subr.mxu0 0.0
    %604 = vmatpush1.msra.mxu0 0.0
    %605 = vmatprep.subr.mxu0 0.0
    %606 = vmatpush1.msra.mxu0 0.0
    %607 = vmatprep.subr.mxu0 0.0
    %608 = vmatpush1.msra.mxu0 0.0
    %609 = vmatprep.subr.mxu0 0.0
    %610 = vmatpush1.msra.mxu0 %v389
    %611 = vmatprep.subr.mxu0 0.0
    %612 = vmatpush2.msra.mxu0 0.0
    %613 = vmatprep.subr.mxu0 0.0
    %614 = vmatpush2.msra.mxu0 0.0
    %615 = vmatprep.subr.mxu0 0.0
    %616 = vmatpush2.msra.mxu0 0.0
    %617 = vmatprep.subr.mxu0 0.0
    %618 = vmatpush2.msra.mxu0 0.0
    %619 = vmatprep.subr.mxu0 0.0
    %620 = vmatpush2.msra.mxu0 0.0
    %621 = vmatprep.subr.mxu0 0.0
    %622 = vmatpush2.msra.mxu0 0.0
    %623 = vmatprep.subr.mxu0 0.0
    %624 = vmatpush2.msra.mxu0 0.0
    %625 = vmatprep.subr.mxu0 0.0
    %626 = vmatpush2.msra.mxu0 0.0
    %627 = vmatprep.subr.mxu0 0.0
    %628 = vmatpush2.msra.mxu0 0.0
    %629 = vmatprep.subr.mxu0 0.0
    %630 = vmatpush2.msra.mxu0 0.0
    %631 = vmatprep.subr.mxu0 0.0
    %632 = vmatpush2.msra.mxu0 0.0
    %633 = vmatprep.subr.mxu0 0.0
    %634 = vmatpush2.msra.mxu0 0.0
    %635 = vmatprep.subr.mxu0 0.0
    %636 = vmatpush2.msra.mxu0 0.0
    %637 = vmatprep.subr.mxu0 0.0
    %638 = vmatpush2.msra.mxu0 0.0
    %639 = vmatprep.subr.mxu0 0.0
    %640 = vmatpush2.msra.mxu0 0.0
    %641 = vmatprep.subr.mxu0 0.0
    %642 = vmatpush2.msra.mxu0 0.0
    %643 = vmatprep.mubr.f32.mxu0 0.0
    %644 = vmatmul.mubr.f32.gmra.mxu0 %v577
    %v645 = vpop.f32.mrf.mxu0
    %v646 = vadd.f32 0.0, %v645
    %v647 = vpop.f32.mrf.mxu0
    %648 = vdwg.mxu0
    %v650 = vsel %vm551, %v573, 0
    %652 = vmatprep.subr.mxu0 0.0
    %653 = vmatpush1.msra.mxu0 0.0
    %654 = vmatprep.subr.mxu0 0.0
    %655 = vmatpush1.msra.mxu0 0.0
    %656 = vmatprep.subr.mxu0 0.0
    %657 = vmatpush1.msra.mxu0 0.0
    %658 = vmatprep.subr.mxu0 0.0
    %659 = vmatpush1.msra.mxu0 0.0
    %660 = vmatprep.subr.mxu0 0.0
    %661 = vmatpush1.msra.mxu0 0.0
    %662 = vmatprep.subr.mxu0 0.0
    %663 = vmatpush1.msra.mxu0 0.0
    %664 = vmatprep.subr.mxu0 0.0
    %665 = vmatpush1.msra.mxu0 0.0
    %666 = vmatprep.subr.mxu0 0.0
    %667 = vmatpush1.msra.mxu0 0.0
    %668 = vmatprep.subr.mxu0 0.0
    %669 = vmatpush1.msra.mxu0 0.0
    %670 = vmatprep.subr.mxu0 0.0
    %671 = vmatpush1.msra.mxu0 0.0
    %672 = vmatprep.subr.mxu0 0.0
    %673 = vmatpush1.msra.mxu0 0.0
    %674 = vmatprep.subr.mxu0 0.0
    %675 = vmatpush1.msra.mxu0 0.0
    %676 = vmatprep.subr.mxu0 0.0
    %677 = vmatpush1.msra.mxu0 0.0
    %678 = vmatprep.subr.mxu0 0.0
    %679 = vmatpush1.msra.mxu0 0.0
    %680 = vmatprep.subr.mxu0 0.0
    %681 = vmatpush1.msra.mxu0 0.0
    %682 = vmatprep.subr.mxu0 0.0
    %683 = vmatpush1.msra.mxu0 %v394
    %684 = vmatprep.subr.mxu0 0.0
    %685 = vmatpush2.msra.mxu0 0.0
    %686 = vmatprep.subr.mxu0 0.0
    %687 = vmatpush2.msra.mxu0 0.0
    %688 = vmatprep.subr.mxu0 0.0
    %689 = vmatpush2.msra.mxu0 0.0
    %690 = vmatprep.subr.mxu0 0.0
    %691 = vmatpush2.msra.mxu0 0.0
    %692 = vmatprep.subr.mxu0 0.0
    %693 = vmatpush2.msra.mxu0 0.0
    %694 = vmatprep.subr.mxu0 0.0
    %695 = vmatpush2.msra.mxu0 0.0
    %696 = vmatprep.subr.mxu0 0.0
    %697 = vmatpush2.msra.mxu0 0.0
    %698 = vmatprep.subr.mxu0 0.0
    %699 = vmatpush2.msra.mxu0 0.0
    %700 = vmatprep.subr.mxu0 0.0
    %701 = vmatpush2.msra.mxu0 0.0
    %702 = vmatprep.subr.mxu0 0.0
    %703 = vmatpush2.msra.mxu0 0.0
    %704 = vmatprep.subr.mxu0 0.0
    %705 = vmatpush2.msra.mxu0 0.0
    %706 = vmatprep.subr.mxu0 0.0
    %707 = vmatpush2.msra.mxu0 0.0
    %708 = vmatprep.subr.mxu0 0.0
    %709 = vmatpush2.msra.mxu0 0.0
    %710 = vmatprep.subr.mxu0 0.0
    %711 = vmatpush2.msra.mxu0 0.0
    %712 = vmatprep.subr.mxu0 0.0
    %713 = vmatpush2.msra.mxu0 0.0
    %714 = vmatprep.subr.mxu0 0.0
    %715 = vmatpush2.msra.mxu0 0.0
    %716 = vmatprep.mubr.f32.mxu0 0.0
    %717 = vmatmul.mubr.f32.gmra.mxu0 %v650
    %v718 = vpop.f32.mrf.mxu0
    %v719 = vadd.f32 0.0, %v718
    %v720 = vpop.f32.mrf.mxu0
    %721 = vdwg.mxu0
    %722 = vrot.lane.b32.xlu0 %v312, 96
    %v723 = vpop.permute.xlu0 %722
    %724 = vrot.lane.b32.xlu0 %v314, 96
    %v725 = vpop.permute.xlu0 %724
    %v726 = vsel %vm94, %v723, 0
    %v728 = vsel %vm94, %v725, 0
    %730 = vmatprep.subr.mxu0 0.0
    %731 = vmatpush1.xpose.msra.mxu0 0.0
    %732 = vmatprep.subr.mxu0 0.0
    %733 = vmatpush1.xpose.msra.mxu0 0.0
    %734 = vmatprep.subr.mxu0 0.0
    %735 = vmatpush1.xpose.msra.mxu0 0.0
    %736 = vmatprep.subr.mxu0 0.0
    %737 = vmatpush1.xpose.msra.mxu0 0.0
    %738 = vmatprep.subr.mxu0 0.0
    %739 = vmatpush1.xpose.msra.mxu0 0.0
    %740 = vmatprep.subr.mxu0 0.0
    %741 = vmatpush1.xpose.msra.mxu0 0.0
    %742 = vmatprep.subr.mxu0 0.0
    %743 = vmatpush1.xpose.msra.mxu0 0.0
    %744 = vmatprep.subr.mxu0 0.0
    %745 = vmatpush1.xpose.msra.mxu0 0.0
    %746 = vmatprep.subr.mxu0 0.0
    %747 = vmatpush1.xpose.msra.mxu0 0.0
    %748 = vmatprep.subr.mxu0 0.0
    %749 = vmatpush1.xpose.msra.mxu0 0.0
    %750 = vmatprep.subr.mxu0 0.0
    %751 = vmatpush1.xpose.msra.mxu0 0.0
    %752 = vmatprep.subr.mxu0 0.0
    %753 = vmatpush1.xpose.msra.mxu0 0.0
    %754 = vmatprep.subr.mxu0 0.0
    %755 = vmatpush1.xpose.msra.mxu0 0.0
    %756 = vmatprep.subr.mxu0 0.0
    %757 = vmatpush1.xpose.msra.mxu0 0.0
    %758 = vmatprep.subr.mxu0 0.0
    %759 = vmatpush1.xpose.msra.mxu0 0.0
    %760 = vmatprep.subr.mxu0 0.0
    %761 = vmatpush1.xpose.msra.mxu0 %v728
    %762 = vmatprep.subr.mxu0 0.0
    %763 = vmatpush2.xpose.msra.mxu0 0.0
    %764 = vmatprep.subr.mxu0 0.0
    %765 = vmatpush2.xpose.msra.mxu0 0.0
    %766 = vmatprep.subr.mxu0 0.0
    %767 = vmatpush2.xpose.msra.mxu0 0.0
    %768 = vmatprep.subr.mxu0 0.0
    %769 = vmatpush2.xpose.msra.mxu0 0.0
    %770 = vmatprep.subr.mxu0 0.0
    %771 = vmatpush2.xpose.msra.mxu0 0.0
    %772 = vmatprep.subr.mxu0 0.0
    %773 = vmatpush2.xpose.msra.mxu0 0.0
    %774 = vmatprep.subr.mxu0 0.0
    %775 = vmatpush2.xpose.msra.mxu0 0.0
    %776 = vmatprep.subr.mxu0 0.0
    %777 = vmatpush2.xpose.msra.mxu0 0.0
    %778 = vmatprep.subr.mxu0 0.0
    %779 = vmatpush2.xpose.msra.mxu0 0.0
    %780 = vmatprep.subr.mxu0 0.0
    %781 = vmatpush2.xpose.msra.mxu0 0.0
    %782 = vmatprep.subr.mxu0 0.0
    %783 = vmatpush2.xpose.msra.mxu0 0.0
    %784 = vmatprep.subr.mxu0 0.0
    %785 = vmatpush2.xpose.msra.mxu0 0.0
    %786 = vmatprep.subr.mxu0 0.0
    %787 = vmatpush2.xpose.msra.mxu0 0.0
    %788 = vmatprep.subr.mxu0 0.0
    %789 = vmatpush2.xpose.msra.mxu0 0.0
    %790 = vmatprep.subr.mxu0 0.0
    %791 = vmatpush2.xpose.msra.mxu0 0.0
    %792 = vmatprep.subr.mxu0 0.0
    %793 = vmatpush2.xpose.msra.mxu0 0.0
    %794 = vmatprep.mubr.f32.mxu0 0.0
    %795 = vmatmul.mubr.f32.gmra.mxu0 %v726
    %v796 = vpop.f32.mrf.mxu0
    %v797 = vadd.f32 0.0, %v796
    %v798 = vpop.f32.mrf.mxu0
    %799 = vdwg.mxu0
    %800 = vrot.lane.b32.xlu0 %v318, 96
    %v801 = vpop.permute.xlu0 %800
    %802 = vrot.lane.b32.xlu0 %v320, 96
    %v803 = vpop.permute.xlu0 %802
    %v804 = vsel %vm94, %v801, 0
    %v806 = vsel %vm94, %v803, 0
    %808 = vmatprep.subr.mxu0 0.0
    %809 = vmatpush1.xpose.msra.mxu0 0.0
    %810 = vmatprep.subr.mxu0 0.0
    %811 = vmatpush1.xpose.msra.mxu0 0.0
    %812 = vmatprep.subr.mxu0 0.0
    %813 = vmatpush1.xpose.msra.mxu0 0.0
    %814 = vmatprep.subr.mxu0 0.0
    %815 = vmatpush1.xpose.msra.mxu0 0.0
    %816 = vmatprep.subr.mxu0 0.0
    %817 = vmatpush1.xpose.msra.mxu0 0.0
    %818 = vmatprep.subr.mxu0 0.0
    %819 = vmatpush1.xpose.msra.mxu0 0.0
    %820 = vmatprep.subr.mxu0 0.0
    %821 = vmatpush1.xpose.msra.mxu0 0.0
    %822 = vmatprep.subr.mxu0 0.0
    %823 = vmatpush1.xpose.msra.mxu0 0.0
    %824 = vmatprep.subr.mxu0 0.0
    %825 = vmatpush1.xpose.msra.mxu0 0.0
    %826 = vmatprep.subr.mxu0 0.0
    %827 = vmatpush1.xpose.msra.mxu0 0.0
    %828 = vmatprep.subr.mxu0 0.0
    %829 = vmatpush1.xpose.msra.mxu0 0.0
    %830 = vmatprep.subr.mxu0 0.0
    %831 = vmatpush1.xpose.msra.mxu0 0.0
    %832 = vmatprep.subr.mxu0 0.0
    %833 = vmatpush1.xpose.msra.mxu0 0.0
    %834 = vmatprep.subr.mxu0 0.0
    %835 = vmatpush1.xpose.msra.mxu0 0.0
    %836 = vmatprep.subr.mxu0 0.0
    %837 = vmatpush1.xpose.msra.mxu0 0.0
    %838 = vmatprep.subr.mxu0 0.0
    %839 = vmatpush1.xpose.msra.mxu0 %v806
    %840 = vmatprep.subr.mxu0 0.0
    %841 = vmatpush2.xpose.msra.mxu0 0.0
    %842 = vmatprep.subr.mxu0 0.0
    %843 = vmatpush2.xpose.msra.mxu0 0.0
    %844 = vmatprep.subr.mxu0 0.0
    %845 = vmatpush2.xpose.msra.mxu0 0.0
    %846 = vmatprep.subr.mxu0 0.0
    %847 = vmatpush2.xpose.msra.mxu0 0.0
    %848 = vmatprep.subr.mxu0 0.0
    %849 = vmatpush2.xpose.msra.mxu0 0.0
    %850 = vmatprep.subr.mxu0 0.0
    %851 = vmatpush2.xpose.msra.mxu0 0.0
    %852 = vmatprep.subr.mxu0 0.0
    %853 = vmatpush2.xpose.msra.mxu0 0.0
    %854 = vmatprep.subr.mxu0 0.0
    %855 = vmatpush2.xpose.msra.mxu0 0.0
    %856 = vmatprep.subr.mxu0 0.0
    %857 = vmatpush2.xpose.msra.mxu0 0.0
    %858 = vmatprep.subr.mxu0 0.0
    %859 = vmatpush2.xpose.msra.mxu0 0.0
    %860 = vmatprep.subr.mxu0 0.0
    %861 = vmatpush2.xpose.msra.mxu0 0.0
    %862 = vmatprep.subr.mxu0 0.0
    %863 = vmatpush2.xpose.msra.mxu0 0.0
    %864 = vmatprep.subr.mxu0 0.0
    %865 = vmatpush2.xpose.msra.mxu0 0.0
    %866 = vmatprep.subr.mxu0 0.0
    %867 = vmatpush2.xpose.msra.mxu0 0.0
    %868 = vmatprep.subr.mxu0 0.0
    %869 = vmatpush2.xpose.msra.mxu0 0.0
    %870 = vmatprep.subr.mxu0 0.0
    %871 = vmatpush2.xpose.msra.mxu0 0.0
    %872 = vmatprep.mubr.f32.mxu0 0.0
    %873 = vmatmul.mubr.f32.gmra.mxu0 %v804
    %v874 = vpop.f32.mrf.mxu0
    %v875 = vadd.f32 0.0, %v874
    %v876 = vpop.f32.mrf.mxu0
    %877 = vdwg.mxu0
    %v878 = vmul.f32 %v797, 0.17677669
    %v879 = vmul.f32 %v875, 0.17677669
    %v880 = vsel %vm551, %v878, -inf
    %881 = vmax.xlane.f32.xlu0 %v880
    %v882 = vpop.xlane.xlu0 %881
    %v883 = vsel %vm551, %v879, -inf
    %884 = vmax.xlane.f32.xlu0 %v883
    %v885 = vpop.xlane.xlu0 %884
    %v886 = vsub.f32 %v878, %v882
    %v887 = vsub.f32 %v879, %v885
    %v888 = vmul.f32 %v886, 1.442695
    %v889 = vpow.pop %v888
    %v890 = vmul.f32 %v887, 1.442695
    %v891 = vpow.pop %v890
    %v892 = vsel %vm551, %v889, 0.0
    %893 = vadd.xlane.f32.xlu0 %v892
    %v894 = vpop.xlane.xlu0 %893
    %v895 = vsel %vm551, %v891, 0.0
    %896 = vadd.xlane.f32.xlu0 %v895
    %v897 = vpop.xlane.xlu0 %896
    %v898 = vrcp.pop %v894
    %v899 = vrcp.pop %v897
    %v900 = vmul.f32 %v889, %v898
    %v901 = vmul.f32 %v891, %v899
    %s902 = scalar_lea.vmem %s13, 16
    %903 = vst.msk [vmem:[%s902] sm:$0xff] %vm551, %v900
    %904 = vst.msk [vmem:[%s902 + $0x8] sm:$0xff] %vm551, %v901
    %906 = vrot.lane.b32.xlu0 %v389, 96
    %v907 = vpop.permute.xlu0 %906
    %v910 = vsel %vm551, %v900, 0
    %912 = vmatprep.subr.mxu0 0.0
    %913 = vmatpush1.msra.mxu0 0.0
    %914 = vmatprep.subr.mxu0 0.0
    %915 = vmatpush1.msra.mxu0 0.0
    %916 = vmatprep.subr.mxu0 0.0
    %917 = vmatpush1.msra.mxu0 0.0
    %918 = vmatprep.subr.mxu0 0.0
    %919 = vmatpush1.msra.mxu0 0.0
    %920 = vmatprep.subr.mxu0 0.0
    %921 = vmatpush1.msra.mxu0 0.0
    %922 = vmatprep.subr.mxu0 0.0
    %923 = vmatpush1.msra.mxu0 0.0
    %924 = vmatprep.subr.mxu0 0.0
    %925 = vmatpush1.msra.mxu0 0.0
    %926 = vmatprep.subr.mxu0 0.0
    %927 = vmatpush1.msra.mxu0 0.0
    %928 = vmatprep.subr.mxu0 0.0
    %929 = vmatpush1.msra.mxu0 0.0
    %930 = vmatprep.subr.mxu0 0.0
    %931 = vmatpush1.msra.mxu0 0.0
    %932 = vmatprep.subr.mxu0 0.0
    %933 = vmatpush1.msra.mxu0 0.0
    %934 = vmatprep.subr.mxu0 0.0
    %935 = vmatpush1.msra.mxu0 0.0
    %936 = vmatprep.subr.mxu0 0.0
    %937 = vmatpush1.msra.mxu0 0.0
    %938 = vmatprep.subr.mxu0 0.0
    %939 = vmatpush1.msra.mxu0 0.0
    %940 = vmatprep.subr.mxu0 0.0
    %941 = vmatpush1.msra.mxu0 0.0
    %942 = vmatprep.subr.mxu0 0.0
    %943 = vmatpush1.msra.mxu0 %v907
    %944 = vmatprep.subr.mxu0 0.0
    %945 = vmatpush2.msra.mxu0 0.0
    %946 = vmatprep.subr.mxu0 0.0
    %947 = vmatpush2.msra.mxu0 0.0
    %948 = vmatprep.subr.mxu0 0.0
    %949 = vmatpush2.msra.mxu0 0.0
    %950 = vmatprep.subr.mxu0 0.0
    %951 = vmatpush2.msra.mxu0 0.0
    %952 = vmatprep.subr.mxu0 0.0
    %953 = vmatpush2.msra.mxu0 0.0
    %954 = vmatprep.subr.mxu0 0.0
    %955 = vmatpush2.msra.mxu0 0.0
    %956 = vmatprep.subr.mxu0 0.0
    %957 = vmatpush2.msra.mxu0 0.0
    %958 = vmatprep.subr.mxu0 0.0
    %959 = vmatpush2.msra.mxu0 0.0
    %960 = vmatprep.subr.mxu0 0.0
    %961 = vmatpush2.msra.mxu0 0.0
    %962 = vmatprep.subr.mxu0 0.0
    %963 = vmatpush2.msra.mxu0 0.0
    %964 = vmatprep.subr.mxu0 0.0
    %965 = vmatpush2.msra.mxu0 0.0
    %966 = vmatprep.subr.mxu0 0.0
    %967 = vmatpush2.msra.mxu0 0.0
    %968 = vmatprep.subr.mxu0 0.0
    %969 = vmatpush2.msra.mxu0 0.0
    %970 = vmatprep.subr.mxu0 0.0
    %971 = vmatpush2.msra.mxu0 0.0
    %972 = vmatprep.subr.mxu0 0.0
    %973 = vmatpush2.msra.mxu0 0.0
    %974 = vmatprep.subr.mxu0 0.0
    %975 = vmatpush2.msra.mxu0 0.0
    %976 = vmatprep.mubr.f32.mxu0 0.0
    %977 = vmatmul.mubr.f32.gmra.mxu0 %v910
    %v978 = vpop.f32.mrf.mxu0
    %v979 = vadd.f32 0.0, %v978
    %v980 = vpop.f32.mrf.mxu0
    %981 = vdwg.mxu0
    %983 = vrot.lane.b32.xlu0 %v394, 96
    %v984 = vpop.permute.xlu0 %983
    %v987 = vsel %vm551, %v901, 0
    %989 = vmatprep.subr.mxu0 0.0
    %990 = vmatpush1.msra.mxu0 0.0
    %991 = vmatprep.subr.mxu0 0.0
    %992 = vmatpush1.msra.mxu0 0.0
    %993 = vmatprep.subr.mxu0 0.0
    %994 = vmatpush1.msra.mxu0 0.0
    %995 = vmatprep.subr.mxu0 0.0
    %996 = vmatpush1.msra.mxu0 0.0
    %997 = vmatprep.subr.mxu0 0.0
    %998 = vmatpush1.msra.mxu0 0.0
    %999 = vmatprep.subr.mxu0 0.0
    %1000 = vmatpush1.msra.mxu0 0.0
    %1001 = vmatprep.subr.mxu0 0.0
    %1002 = vmatpush1.msra.mxu0 0.0
    %1003 = vmatprep.subr.mxu0 0.0
    %1004 = vmatpush1.msra.mxu0 0.0
    %1005 = vmatprep.subr.mxu0 0.0
    %1006 = vmatpush1.msra.mxu0 0.0
    %1007 = vmatprep.subr.mxu0 0.0
    %1008 = vmatpush1.msra.mxu0 0.0
    %1009 = vmatprep.subr.mxu0 0.0
    %1010 = vmatpush1.msra.mxu0 0.0
    %1011 = vmatprep.subr.mxu0 0.0
    %1012 = vmatpush1.msra.mxu0 0.0
    %1013 = vmatprep.subr.mxu0 0.0
    %1014 = vmatpush1.msra.mxu0 0.0
    %1015 = vmatprep.subr.mxu0 0.0
    %1016 = vmatpush1.msra.mxu0 0.0
    %1017 = vmatprep.subr.mxu0 0.0
    %1018 = vmatpush1.msra.mxu0 0.0
    %1019 = vmatprep.subr.mxu0 0.0
    %1020 = vmatpush1.msra.mxu0 %v984
    %1021 = vmatprep.subr.mxu0 0.0
    %1022 = vmatpush2.msra.mxu0 0.0
    %1023 = vmatprep.subr.mxu0 0.0
    %1024 = vmatpush2.msra.mxu0 0.0
    %1025 = vmatprep.subr.mxu0 0.0
    %1026 = vmatpush2.msra.mxu0 0.0
    %1027 = vmatprep.subr.mxu0 0.0
    %1028 = vmatpush2.msra.mxu0 0.0
    %1029 = vmatprep.subr.mxu0 0.0
    %1030 = vmatpush2.msra.mxu0 0.0
    %1031 = vmatprep.subr.mxu0 0.0
    %1032 = vmatpush2.msra.mxu0 0.0
    %1033 = vmatprep.subr.mxu0 0.0
    %1034 = vmatpush2.msra.mxu0 0.0
    %1035 = vmatprep.subr.mxu0 0.0
    %1036 = vmatpush2.msra.mxu0 0.0
    %1037 = vmatprep.subr.mxu0 0.0
    %1038 = vmatpush2.msra.mxu0 0.0
    %1039 = vmatprep.subr.mxu0 0.0
    %1040 = vmatpush2.msra.mxu0 0.0
    %1041 = vmatprep.subr.mxu0 0.0
    %1042 = vmatpush2.msra.mxu0 0.0
    %1043 = vmatprep.subr.mxu0 0.0
    %1044 = vmatpush2.msra.mxu0 0.0
    %1045 = vmatprep.subr.mxu0 0.0
    %1046 = vmatpush2.msra.mxu0 0.0
    %1047 = vmatprep.subr.mxu0 0.0
    %1048 = vmatpush2.msra.mxu0 0.0
    %1049 = vmatprep.subr.mxu0 0.0
    %1050 = vmatpush2.msra.mxu0 0.0
    %1051 = vmatprep.subr.mxu0 0.0
    %1052 = vmatpush2.msra.mxu0 0.0
    %1053 = vmatprep.mubr.f32.mxu0 0.0
    %1054 = vmatmul.mubr.f32.gmra.mxu0 %v987
    %v1055 = vpop.f32.mrf.mxu0
    %v1056 = vadd.f32 0.0, %v1055
    %v1057 = vpop.f32.mrf.mxu0
    %1058 = vdwg.mxu0
    %1059 = vrot.lane.b32.xlu0 %v312, 64
    %v1060 = vpop.permute.xlu0 %1059
    %1061 = vrot.lane.b32.xlu0 %v314, 64
    %v1062 = vpop.permute.xlu0 %1061
    %v1063 = vsel %vm94, %v1060, 0
    %v1065 = vsel %vm94, %v1062, 0
    %1067 = vmatprep.subr.mxu0 0.0
    %1068 = vmatpush1.xpose.msra.mxu0 0.0
    %1069 = vmatprep.subr.mxu0 0.0
    %1070 = vmatpush1.xpose.msra.mxu0 0.0
    %1071 = vmatprep.subr.mxu0 0.0
    %1072 = vmatpush1.xpose.msra.mxu0 0.0
    %1073 = vmatprep.subr.mxu0 0.0
    %1074 = vmatpush1.xpose.msra.mxu0 0.0
    %1075 = vmatprep.subr.mxu0 0.0
    %1076 = vmatpush1.xpose.msra.mxu0 0.0
    %1077 = vmatprep.subr.mxu0 0.0
    %1078 = vmatpush1.xpose.msra.mxu0 0.0
    %1079 = vmatprep.subr.mxu0 0.0
    %1080 = vmatpush1.xpose.msra.mxu0 0.0
    %1081 = vmatprep.subr.mxu0 0.0
    %1082 = vmatpush1.xpose.msra.mxu0 0.0
    %1083 = vmatprep.subr.mxu0 0.0
    %1084 = vmatpush1.xpose.msra.mxu0 0.0
    %1085 = vmatprep.subr.mxu0 0.0
    %1086 = vmatpush1.xpose.msra.mxu0 0.0
    %1087 = vmatprep.subr.mxu0 0.0
    %1088 = vmatpush1.xpose.msra.mxu0 0.0
    %1089 = vmatprep.subr.mxu0 0.0
    %1090 = vmatpush1.xpose.msra.mxu0 0.0
    %1091 = vmatprep.subr.mxu0 0.0
    %1092 = vmatpush1.xpose.msra.mxu0 0.0
    %1093 = vmatprep.subr.mxu0 0.0
    %1094 = vmatpush1.xpose.msra.mxu0 0.0
    %1095 = vmatprep.subr.mxu0 0.0
    %1096 = vmatpush1.xpose.msra.mxu0 0.0
    %1097 = vmatprep.subr.mxu0 0.0
    %1098 = vmatpush1.xpose.msra.mxu0 %v1065
    %1099 = vmatprep.subr.mxu0 0.0
    %1100 = vmatpush2.xpose.msra.mxu0 0.0
    %1101 = vmatprep.subr.mxu0 0.0
    %1102 = vmatpush2.xpose.msra.mxu0 0.0
    %1103 = vmatprep.subr.mxu0 0.0
    %1104 = vmatpush2.xpose.msra.mxu0 0.0
    %1105 = vmatprep.subr.mxu0 0.0
    %1106 = vmatpush2.xpose.msra.mxu0 0.0
    %1107 = vmatprep.subr.mxu0 0.0
    %1108 = vmatpush2.xpose.msra.mxu0 0.0
    %1109 = vmatprep.subr.mxu0 0.0
    %1110 = vmatpush2.xpose.msra.mxu0 0.0
    %1111 = vmatprep.subr.mxu0 0.0
    %1112 = vmatpush2.xpose.msra.mxu0 0.0
    %1113 = vmatprep.subr.mxu0 0.0
    %1114 = vmatpush2.xpose.msra.mxu0 0.0
    %1115 = vmatprep.subr.mxu0 0.0
    %1116 = vmatpush2.xpose.msra.mxu0 0.0
    %1117 = vmatprep.subr.mxu0 0.0
    %1118 = vmatpush2.xpose.msra.mxu0 0.0
    %1119 = vmatprep.subr.mxu0 0.0
    %1120 = vmatpush2.xpose.msra.mxu0 0.0
    %1121 = vmatprep.subr.mxu0 0.0
    %1122 = vmatpush2.xpose.msra.mxu0 0.0
    %1123 = vmatprep.subr.mxu0 0.0
    %1124 = vmatpush2.xpose.msra.mxu0 0.0
    %1125 = vmatprep.subr.mxu0 0.0
    %1126 = vmatpush2.xpose.msra.mxu0 0.0
    %1127 = vmatprep.subr.mxu0 0.0
    %1128 = vmatpush2.xpose.msra.mxu0 0.0
    %1129 = vmatprep.subr.mxu0 0.0
    %1130 = vmatpush2.xpose.msra.mxu0 0.0
    %1131 = vmatprep.mubr.f32.mxu0 0.0
    %1132 = vmatmul.mubr.f32.gmra.mxu0 %v1063
    %v1133 = vpop.f32.mrf.mxu0
    %v1134 = vadd.f32 0.0, %v1133
    %v1135 = vpop.f32.mrf.mxu0
    %1136 = vdwg.mxu0
    %1137 = vrot.lane.b32.xlu0 %v318, 64
    %v1138 = vpop.permute.xlu0 %1137
    %1139 = vrot.lane.b32.xlu0 %v320, 64
    %v1140 = vpop.permute.xlu0 %1139
    %v1141 = vsel %vm94, %v1138, 0
    %v1143 = vsel %vm94, %v1140, 0
    %1145 = vmatprep.subr.mxu0 0.0
    %1146 = vmatpush1.xpose.msra.mxu0 0.0
    %1147 = vmatprep.subr.mxu0 0.0
    %1148 = vmatpush1.xpose.msra.mxu0 0.0
    %1149 = vmatprep.subr.mxu0 0.0
    %1150 = vmatpush1.xpose.msra.mxu0 0.0
    %1151 = vmatprep.subr.mxu0 0.0
    %1152 = vmatpush1.xpose.msra.mxu0 0.0
    %1153 = vmatprep.subr.mxu0 0.0
    %1154 = vmatpush1.xpose.msra.mxu0 0.0
    %1155 = vmatprep.subr.mxu0 0.0
    %1156 = vmatpush1.xpose.msra.mxu0 0.0
    %1157 = vmatprep.subr.mxu0 0.0
    %1158 = vmatpush1.xpose.msra.mxu0 0.0
    %1159 = vmatprep.subr.mxu0 0.0
    %1160 = vmatpush1.xpose.msra.mxu0 0.0
    %1161 = vmatprep.subr.mxu0 0.0
    %1162 = vmatpush1.xpose.msra.mxu0 0.0
    %1163 = vmatprep.subr.mxu0 0.0
    %1164 = vmatpush1.xpose.msra.mxu0 0.0
    %1165 = vmatprep.subr.mxu0 0.0
    %1166 = vmatpush1.xpose.msra.mxu0 0.0
    %1167 = vmatprep.subr.mxu0 0.0
    %1168 = vmatpush1.xpose.msra.mxu0 0.0
    %1169 = vmatprep.subr.mxu0 0.0
    %1170 = vmatpush1.xpose.msra.mxu0 0.0
    %1171 = vmatprep.subr.mxu0 0.0
    %1172 = vmatpush1.xpose.msra.mxu0 0.0
    %1173 = vmatprep.subr.mxu0 0.0
    %1174 = vmatpush1.xpose.msra.mxu0 0.0
    %1175 = vmatprep.subr.mxu0 0.0
    %1176 = vmatpush1.xpose.msra.mxu0 %v1143
    %1177 = vmatprep.subr.mxu0 0.0
    %1178 = vmatpush2.xpose.msra.mxu0 0.0
    %1179 = vmatprep.subr.mxu0 0.0
    %1180 = vmatpush2.xpose.msra.mxu0 0.0
    %1181 = vmatprep.subr.mxu0 0.0
    %1182 = vmatpush2.xpose.msra.mxu0 0.0
    %1183 = vmatprep.subr.mxu0 0.0
    %1184 = vmatpush2.xpose.msra.mxu0 0.0
    %1185 = vmatprep.subr.mxu0 0.0
    %1186 = vmatpush2.xpose.msra.mxu0 0.0
    %1187 = vmatprep.subr.mxu0 0.0
    %1188 = vmatpush2.xpose.msra.mxu0 0.0
    %1189 = vmatprep.subr.mxu0 0.0
    %1190 = vmatpush2.xpose.msra.mxu0 0.0
    %1191 = vmatprep.subr.mxu0 0.0
    %1192 = vmatpush2.xpose.msra.mxu0 0.0
    %1193 = vmatprep.subr.mxu0 0.0
    %1194 = vmatpush2.xpose.msra.mxu0 0.0
    %1195 = vmatprep.subr.mxu0 0.0
    %1196 = vmatpush2.xpose.msra.mxu0 0.0
    %1197 = vmatprep.subr.mxu0 0.0
    %1198 = vmatpush2.xpose.msra.mxu0 0.0
    %1199 = vmatprep.subr.mxu0 0.0
    %1200 = vmatpush2.xpose.msra.mxu0 0.0
    %1201 = vmatprep.subr.mxu0 0.0
    %1202 = vmatpush2.xpose.msra.mxu0 0.0
    %1203 = vmatprep.subr.mxu0 0.0
    %1204 = vmatpush2.xpose.msra.mxu0 0.0
    %1205 = vmatprep.subr.mxu0 0.0
    %1206 = vmatpush2.xpose.msra.mxu0 0.0
    %1207 = vmatprep.subr.mxu0 0.0
    %1208 = vmatpush2.xpose.msra.mxu0 0.0
    %1209 = vmatprep.mubr.f32.mxu0 0.0
    %1210 = vmatmul.mubr.f32.gmra.mxu0 %v1141
    %v1211 = vpop.f32.mrf.mxu0
    %v1212 = vadd.f32 0.0, %v1211
    %v1213 = vpop.f32.mrf.mxu0
    %1214 = vdwg.mxu0
    %v1215 = vmul.f32 %v1134, 0.17677669
    %v1216 = vmul.f32 %v1212, 0.17677669
    %v1217 = vsel %vm551, %v1215, -inf
    %1218 = vmax.xlane.f32.xlu0 %v1217
    %v1219 = vpop.xlane.xlu0 %1218
    %v1220 = vsel %vm551, %v1216, -inf
    %1221 = vmax.xlane.f32.xlu0 %v1220
    %v1222 = vpop.xlane.xlu0 %1221
    %v1223 = vsub.f32 %v1215, %v1219
    %v1224 = vsub.f32 %v1216, %v1222
    %v1225 = vmul.f32 %v1223, 1.442695
    %v1226 = vpow.pop %v1225
    %v1227 = vmul.f32 %v1224, 1.442695
    %v1228 = vpow.pop %v1227
    %v1229 = vsel %vm551, %v1226, 0.0
    %1230 = vadd.xlane.f32.xlu0 %v1229
    %v1231 = vpop.xlane.xlu0 %1230
    %v1232 = vsel %vm551, %v1228, 0.0
    %1233 = vadd.xlane.f32.xlu0 %v1232
    %v1234 = vpop.xlane.xlu0 %1233
    %v1235 = vrcp.pop %v1231
    %v1236 = vrcp.pop %v1234
    %v1237 = vmul.f32 %v1226, %v1235
    %v1238 = vmul.f32 %v1228, %v1236
    %s1239 = scalar_lea.vmem %s13, 32
    %1240 = vst.msk [vmem:[%s1239] sm:$0xff] %vm551, %v1237
    %1241 = vst.msk [vmem:[%s1239 + $0x8] sm:$0xff] %vm551, %v1238
    %1242 = vrot.lane.b32.xlu0 %v389, 64
    %v1243 = vpop.permute.xlu0 %1242
    %v1246 = vsel %vm551, %v1237, 0
    %1248 = vmatprep.subr.mxu0 0.0
    %1249 = vmatpush1.msra.mxu0 0.0
    %1250 = vmatprep.subr.mxu0 0.0
    %1251 = vmatpush1.msra.mxu0 0.0
    %1252 = vmatprep.subr.mxu0 0.0
    %1253 = vmatpush1.msra.mxu0 0.0
    %1254 = vmatprep.subr.mxu0 0.0
    %1255 = vmatpush1.msra.mxu0 0.0
    %1256 = vmatprep.subr.mxu0 0.0
    %1257 = vmatpush1.msra.mxu0 0.0
    %1258 = vmatprep.subr.mxu0 0.0
    %1259 = vmatpush1.msra.mxu0 0.0
    %1260 = vmatprep.subr.mxu0 0.0
    %1261 = vmatpush1.msra.mxu0 0.0
    %1262 = vmatprep.subr.mxu0 0.0
    %1263 = vmatpush1.msra.mxu0 0.0
    %1264 = vmatprep.subr.mxu0 0.0
    %1265 = vmatpush1.msra.mxu0 0.0
    %1266 = vmatprep.subr.mxu0 0.0
    %1267 = vmatpush1.msra.mxu0 0.0
    %1268 = vmatprep.subr.mxu0 0.0
    %1269 = vmatpush1.msra.mxu0 0.0
    %1270 = vmatprep.subr.mxu0 0.0
    %1271 = vmatpush1.msra.mxu0 0.0
    %1272 = vmatprep.subr.mxu0 0.0
    %1273 = vmatpush1.msra.mxu0 0.0
    %1274 = vmatprep.subr.mxu0 0.0
    %1275 = vmatpush1.msra.mxu0 0.0
    %1276 = vmatprep.subr.mxu0 0.0
    %1277 = vmatpush1.msra.mxu0 0.0
    %1278 = vmatprep.subr.mxu0 0.0
    %1279 = vmatpush1.msra.mxu0 %v1243
    %1280 = vmatprep.subr.mxu0 0.0
    %1281 = vmatpush2.msra.mxu0 0.0
    %1282 = vmatprep.subr.mxu0 0.0
    %1283 = vmatpush2.msra.mxu0 0.0
    %1284 = vmatprep.subr.mxu0 0.0
    %1285 = vmatpush2.msra.mxu0 0.0
    %1286 = vmatprep.subr.mxu0 0.0
    %1287 = vmatpush2.msra.mxu0 0.0
    %1288 = vmatprep.subr.mxu0 0.0
    %1289 = vmatpush2.msra.mxu0 0.0
    %1290 = vmatprep.subr.mxu0 0.0
    %1291 = vmatpush2.msra.mxu0 0.0
    %1292 = vmatprep.subr.mxu0 0.0
    %1293 = vmatpush2.msra.mxu0 0.0
    %1294 = vmatprep.subr.mxu0 0.0
    %1295 = vmatpush2.msra.mxu0 0.0
    %1296 = vmatprep.subr.mxu0 0.0
    %1297 = vmatpush2.msra.mxu0 0.0
    %1298 = vmatprep.subr.mxu0 0.0
    %1299 = vmatpush2.msra.mxu0 0.0
    %1300 = vmatprep.subr.mxu0 0.0
    %1301 = vmatpush2.msra.mxu0 0.0
    %1302 = vmatprep.subr.mxu0 0.0
    %1303 = vmatpush2.msra.mxu0 0.0
    %1304 = vmatprep.subr.mxu0 0.0
    %1305 = vmatpush2.msra.mxu0 0.0
    %1306 = vmatprep.subr.mxu0 0.0
    %1307 = vmatpush2.msra.mxu0 0.0
    %1308 = vmatprep.subr.mxu0 0.0
    %1309 = vmatpush2.msra.mxu0 0.0
    %1310 = vmatprep.subr.mxu0 0.0
    %1311 = vmatpush2.msra.mxu0 0.0
    %1312 = vmatprep.mubr.f32.mxu0 0.0
    %1313 = vmatmul.mubr.f32.gmra.mxu0 %v1246
    %v1314 = vpop.f32.mrf.mxu0
    %v1315 = vadd.f32 0.0, %v1314
    %v1316 = vpop.f32.mrf.mxu0
    %1317 = vdwg.mxu0
    %1318 = vrot.lane.b32.xlu0 %v394, 64
    %v1319 = vpop.permute.xlu0 %1318
    %v1322 = vsel %vm551, %v1238, 0
    %1324 = vmatprep.subr.mxu0 0.0
    %1325 = vmatpush1.msra.mxu0 0.0
    %1326 = vmatprep.subr.mxu0 0.0
    %1327 = vmatpush1.msra.mxu0 0.0
    %1328 = vmatprep.subr.mxu0 0.0
    %1329 = vmatpush1.msra.mxu0 0.0
    %1330 = vmatprep.subr.mxu0 0.0
    %1331 = vmatpush1.msra.mxu0 0.0
    %1332 = vmatprep.subr.mxu0 0.0
    %1333 = vmatpush1.msra.mxu0 0.0
    %1334 = vmatprep.subr.mxu0 0.0
    %1335 = vmatpush1.msra.mxu0 0.0
    %1336 = vmatprep.subr.mxu0 0.0
    %1337 = vmatpush1.msra.mxu0 0.0
    %1338 = vmatprep.subr.mxu0 0.0
    %1339 = vmatpush1.msra.mxu0 0.0
    %1340 = vmatprep.subr.mxu0 0.0
    %1341 = vmatpush1.msra.mxu0 0.0
    %1342 = vmatprep.subr.mxu0 0.0
    %1343 = vmatpush1.msra.mxu0 0.0
    %1344 = vmatprep.subr.mxu0 0.0
    %1345 = vmatpush1.msra.mxu0 0.0
    %1346 = vmatprep.subr.mxu0 0.0
    %1347 = vmatpush1.msra.mxu0 0.0
    %1348 = vmatprep.subr.mxu0 0.0
    %1349 = vmatpush1.msra.mxu0 0.0
    %1350 = vmatprep.subr.mxu0 0.0
    %1351 = vmatpush1.msra.mxu0 0.0
    %1352 = vmatprep.subr.mxu0 0.0
    %1353 = vmatpush1.msra.mxu0 0.0
    %1354 = vmatprep.subr.mxu0 0.0
    %1355 = vmatpush1.msra.mxu0 %v1319
    %1356 = vmatprep.subr.mxu0 0.0
    %1357 = vmatpush2.msra.mxu0 0.0
    %1358 = vmatprep.subr.mxu0 0.0
    %1359 = vmatpush2.msra.mxu0 0.0
    %1360 = vmatprep.subr.mxu0 0.0
    %1361 = vmatpush2.msra.mxu0 0.0
    %1362 = vmatprep.subr.mxu0 0.0
    %1363 = vmatpush2.msra.mxu0 0.0
    %1364 = vmatprep.subr.mxu0 0.0
    %1365 = vmatpush2.msra.mxu0 0.0
    %1366 = vmatprep.subr.mxu0 0.0
    %1367 = vmatpush2.msra.mxu0 0.0
    %1368 = vmatprep.subr.mxu0 0.0
    %1369 = vmatpush2.msra.mxu0 0.0
    %1370 = vmatprep.subr.mxu0 0.0
    %1371 = vmatpush2.msra.mxu0 0.0
    %1372 = vmatprep.subr.mxu0 0.0
    %1373 = vmatpush2.msra.mxu0 0.0
    %1374 = vmatprep.subr.mxu0 0.0
    %1375 = vmatpush2.msra.mxu0 0.0
    %1376 = vmatprep.subr.mxu0 0.0
    %1377 = vmatpush2.msra.mxu0 0.0
    %1378 = vmatprep.subr.mxu0 0.0
    %1379 = vmatpush2.msra.mxu0 0.0
    %1380 = vmatprep.subr.mxu0 0.0
    %1381 = vmatpush2.msra.mxu0 0.0
    %1382 = vmatprep.subr.mxu0 0.0
    %1383 = vmatpush2.msra.mxu0 0.0
    %1384 = vmatprep.subr.mxu0 0.0
    %1385 = vmatpush2.msra.mxu0 0.0
    %1386 = vmatprep.subr.mxu0 0.0
    %1387 = vmatpush2.msra.mxu0 0.0
    %1388 = vmatprep.mubr.f32.mxu0 0.0
    %1389 = vmatmul.mubr.f32.gmra.mxu0 %v1322
    %v1390 = vpop.f32.mrf.mxu0
    %v1391 = vadd.f32 0.0, %v1390
    %v1392 = vpop.f32.mrf.mxu0
    %1393 = vdwg.mxu0
    %1394 = vrot.lane.b32.xlu0 %v312, 32
    %v1395 = vpop.permute.xlu0 %1394
    %1396 = vrot.lane.b32.xlu0 %v314, 32
    %v1397 = vpop.permute.xlu0 %1396
    %v1398 = vsel %vm94, %v1395, 0
    %v1400 = vsel %vm94, %v1397, 0
    %1402 = vmatprep.subr.mxu0 0.0
    %1403 = vmatpush1.xpose.msra.mxu0 0.0
    %1404 = vmatprep.subr.mxu0 0.0
    %1405 = vmatpush1.xpose.msra.mxu0 0.0
    %1406 = vmatprep.subr.mxu0 0.0
    %1407 = vmatpush1.xpose.msra.mxu0 0.0
    %1408 = vmatprep.subr.mxu0 0.0
    %1409 = vmatpush1.xpose.msra.mxu0 0.0
    %1410 = vmatprep.subr.mxu0 0.0
    %1411 = vmatpush1.xpose.msra.mxu0 0.0
    %1412 = vmatprep.subr.mxu0 0.0
    %1413 = vmatpush1.xpose.msra.mxu0 0.0
    %1414 = vmatprep.subr.mxu0 0.0
    %1415 = vmatpush1.xpose.msra.mxu0 0.0
    %1416 = vmatprep.subr.mxu0 0.0
    %1417 = vmatpush1.xpose.msra.mxu0 0.0
    %1418 = vmatprep.subr.mxu0 0.0
    %1419 = vmatpush1.xpose.msra.mxu0 0.0
    %1420 = vmatprep.subr.mxu0 0.0
    %1421 = vmatpush1.xpose.msra.mxu0 0.0
    %1422 = vmatprep.subr.mxu0 0.0
    %1423 = vmatpush1.xpose.msra.mxu0 0.0
    %1424 = vmatprep.subr.mxu0 0.0
    %1425 = vmatpush1.xpose.msra.mxu0 0.0
    %1426 = vmatprep.subr.mxu0 0.0
    %1427 = vmatpush1.xpose.msra.mxu0 0.0
    %1428 = vmatprep.subr.mxu0 0.0
    %1429 = vmatpush1.xpose.msra.mxu0 0.0
    %1430 = vmatprep.subr.mxu0 0.0
    %1431 = vmatpush1.xpose.msra.mxu0 0.0
    %1432 = vmatprep.subr.mxu0 0.0
    %1433 = vmatpush1.xpose.msra.mxu0 %v1400
    %1434 = vmatprep.subr.mxu0 0.0
    %1435 = vmatpush2.xpose.msra.mxu0 0.0
    %1436 = vmatprep.subr.mxu0 0.0
    %1437 = vmatpush2.xpose.msra.mxu0 0.0
    %1438 = vmatprep.subr.mxu0 0.0
    %1439 = vmatpush2.xpose.msra.mxu0 0.0
    %1440 = vmatprep.subr.mxu0 0.0
    %1441 = vmatpush2.xpose.msra.mxu0 0.0
    %1442 = vmatprep.subr.mxu0 0.0
    %1443 = vmatpush2.xpose.msra.mxu0 0.0
    %1444 = vmatprep.subr.mxu0 0.0
    %1445 = vmatpush2.xpose.msra.mxu0 0.0
    %1446 = vmatprep.subr.mxu0 0.0
    %1447 = vmatpush2.xpose.msra.mxu0 0.0
    %1448 = vmatprep.subr.mxu0 0.0
    %1449 = vmatpush2.xpose.msra.mxu0 0.0
    %1450 = vmatprep.subr.mxu0 0.0
    %1451 = vmatpush2.xpose.msra.mxu0 0.0
    %1452 = vmatprep.subr.mxu0 0.0
    %1453 = vmatpush2.xpose.msra.mxu0 0.0
    %1454 = vmatprep.subr.mxu0 0.0
    %1455 = vmatpush2.xpose.msra.mxu0 0.0
    %1456 = vmatprep.subr.mxu0 0.0
    %1457 = vmatpush2.xpose.msra.mxu0 0.0
    %1458 = vmatprep.subr.mxu0 0.0
    %1459 = vmatpush2.xpose.msra.mxu0 0.0
    %1460 = vmatprep.subr.mxu0 0.0
    %1461 = vmatpush2.xpose.msra.mxu0 0.0
    %1462 = vmatprep.subr.mxu0 0.0
    %1463 = vmatpush2.xpose.msra.mxu0 0.0
    %1464 = vmatprep.subr.mxu0 0.0
    %1465 = vmatpush2.xpose.msra.mxu0 0.0
    %1466 = vmatprep.mubr.f32.mxu0 0.0
    %1467 = vmatmul.mubr.f32.gmra.mxu0 %v1398
    %v1468 = vpop.f32.mrf.mxu0
    %v1469 = vadd.f32 0.0, %v1468
    %v1470 = vpop.f32.mrf.mxu0
    %1471 = vdwg.mxu0
    %1472 = vrot.lane.b32.xlu0 %v318, 32
    %v1473 = vpop.permute.xlu0 %1472
    %1474 = vrot.lane.b32.xlu0 %v320, 32
    %v1475 = vpop.permute.xlu0 %1474
    %v1476 = vsel %vm94, %v1473, 0
    %v1478 = vsel %vm94, %v1475, 0
    %1480 = vmatprep.subr.mxu0 0.0
    %1481 = vmatpush1.xpose.msra.mxu0 0.0
    %1482 = vmatprep.subr.mxu0 0.0
    %1483 = vmatpush1.xpose.msra.mxu0 0.0
    %1484 = vmatprep.subr.mxu0 0.0
    %1485 = vmatpush1.xpose.msra.mxu0 0.0
    %1486 = vmatprep.subr.mxu0 0.0
    %1487 = vmatpush1.xpose.msra.mxu0 0.0
    %1488 = vmatprep.subr.mxu0 0.0
    %1489 = vmatpush1.xpose.msra.mxu0 0.0
    %1490 = vmatprep.subr.mxu0 0.0
    %1491 = vmatpush1.xpose.msra.mxu0 0.0
    %1492 = vmatprep.subr.mxu0 0.0
    %1493 = vmatpush1.xpose.msra.mxu0 0.0
    %1494 = vmatprep.subr.mxu0 0.0
    %1495 = vmatpush1.xpose.msra.mxu0 0.0
    %1496 = vmatprep.subr.mxu0 0.0
    %1497 = vmatpush1.xpose.msra.mxu0 0.0
    %1498 = vmatprep.subr.mxu0 0.0
    %1499 = vmatpush1.xpose.msra.mxu0 0.0
    %1500 = vmatprep.subr.mxu0 0.0
    %1501 = vmatpush1.xpose.msra.mxu0 0.0
    %1502 = vmatprep.subr.mxu0 0.0
    %1503 = vmatpush1.xpose.msra.mxu0 0.0
    %1504 = vmatprep.subr.mxu0 0.0
    %1505 = vmatpush1.xpose.msra.mxu0 0.0
    %1506 = vmatprep.subr.mxu0 0.0
    %1507 = vmatpush1.xpose.msra.mxu0 0.0
    %1508 = vmatprep.subr.mxu0 0.0
    %1509 = vmatpush1.xpose.msra.mxu0 0.0
    %1510 = vmatprep.subr.mxu0 0.0
    %1511 = vmatpush1.xpose.msra.mxu0 %v1478
    %1512 = vmatprep.subr.mxu0 0.0
    %1513 = vmatpush2.xpose.msra.mxu0 0.0
    %1514 = vmatprep.subr.mxu0 0.0
    %1515 = vmatpush2.xpose.msra.mxu0 0.0
    %1516 = vmatprep.subr.mxu0 0.0
    %1517 = vmatpush2.xpose.msra.mxu0 0.0
    %1518 = vmatprep.subr.mxu0 0.0
    %1519 = vmatpush2.xpose.msra.mxu0 0.0
    %1520 = vmatprep.subr.mxu0 0.0
    %1521 = vmatpush2.xpose.msra.mxu0 0.0
    %1522 = vmatprep.subr.mxu0 0.0
    %1523 = vmatpush2.xpose.msra.mxu0 0.0
    %1524 = vmatprep.subr.mxu0 0.0
    %1525 = vmatpush2.xpose.msra.mxu0 0.0
    %1526 = vmatprep.subr.mxu0 0.0
    %1527 = vmatpush2.xpose.msra.mxu0 0.0
    %1528 = vmatprep.subr.mxu0 0.0
    %1529 = vmatpush2.xpose.msra.mxu0 0.0
    %1530 = vmatprep.subr.mxu0 0.0
    %1531 = vmatpush2.xpose.msra.mxu0 0.0
    %1532 = vmatprep.subr.mxu0 0.0
    %1533 = vmatpush2.xpose.msra.mxu0 0.0
    %1534 = vmatprep.subr.mxu0 0.0
    %1535 = vmatpush2.xpose.msra.mxu0 0.0
    %1536 = vmatprep.subr.mxu0 0.0
    %1537 = vmatpush2.xpose.msra.mxu0 0.0
    %1538 = vmatprep.subr.mxu0 0.0
    %1539 = vmatpush2.xpose.msra.mxu0 0.0
    %1540 = vmatprep.subr.mxu0 0.0
    %1541 = vmatpush2.xpose.msra.mxu0 0.0
    %1542 = vmatprep.subr.mxu0 0.0
    %1543 = vmatpush2.xpose.msra.mxu0 0.0
    %1544 = vmatprep.mubr.f32.mxu0 0.0
    %1545 = vmatmul.mubr.f32.gmra.mxu0 %v1476
    %v1546 = vpop.f32.mrf.mxu0
    %v1547 = vadd.f32 0.0, %v1546
    %v1548 = vpop.f32.mrf.mxu0
    %1549 = vdwg.mxu0
    %v1550 = vmul.f32 %v1469, 0.17677669
    %v1551 = vmul.f32 %v1547, 0.17677669
    %v1552 = vsel %vm551, %v1550, -inf
    %1553 = vmax.xlane.f32.xlu0 %v1552
    %v1554 = vpop.xlane.xlu0 %1553
    %v1555 = vsel %vm551, %v1551, -inf
    %1556 = vmax.xlane.f32.xlu0 %v1555
    %v1557 = vpop.xlane.xlu0 %1556
    %v1558 = vsub.f32 %v1550, %v1554
    %v1559 = vsub.f32 %v1551, %v1557
    %v1560 = vmul.f32 %v1558, 1.442695
    %v1561 = vpow.pop %v1560
    %v1562 = vmul.f32 %v1559, 1.442695
    %v1563 = vpow.pop %v1562
    %v1564 = vsel %vm551, %v1561, 0.0
    %1565 = vadd.xlane.f32.xlu0 %v1564
    %v1566 = vpop.xlane.xlu0 %1565
    %v1567 = vsel %vm551, %v1563, 0.0
    %1568 = vadd.xlane.f32.xlu0 %v1567
    %v1569 = vpop.xlane.xlu0 %1568
    %v1570 = vrcp.pop %v1566
    %v1571 = vrcp.pop %v1569
    %v1572 = vmul.f32 %v1561, %v1570
    %v1573 = vmul.f32 %v1563, %v1571
    %s1574 = scalar_lea.vmem %s13, 48
    %1575 = vst.msk [vmem:[%s1574] sm:$0xff] %vm551, %v1572
    %1576 = vst.msk [vmem:[%s1574 + $0x8] sm:$0xff] %vm551, %v1573
    %1577 = vrot.lane.b32.xlu0 %v389, 32
    %v1578 = vpop.permute.xlu0 %1577
    %v1581 = vsel %vm551, %v1572, 0
    %1583 = vmatprep.subr.mxu0 0.0
    %1584 = vmatpush1.msra.mxu0 0.0
    %1585 = vmatprep.subr.mxu0 0.0
    %1586 = vmatpush1.msra.mxu0 0.0
    %1587 = vmatprep.subr.mxu0 0.0
    %1588 = vmatpush1.msra.mxu0 0.0
    %1589 = vmatprep.subr.mxu0 0.0
    %1590 = vmatpush1.msra.mxu0 0.0
    %1591 = vmatprep.subr.mxu0 0.0
    %1592 = vmatpush1.msra.mxu0 0.0
    %1593 = vmatprep.subr.mxu0 0.0
    %1594 = vmatpush1.msra.mxu0 0.0
    %1595 = vmatprep.subr.mxu0 0.0
    %1596 = vmatpush1.msra.mxu0 0.0
    %1597 = vmatprep.subr.mxu0 0.0
    %1598 = vmatpush1.msra.mxu0 0.0
    %1599 = vmatprep.subr.mxu0 0.0
    %1600 = vmatpush1.msra.mxu0 0.0
    %1601 = vmatprep.subr.mxu0 0.0
    %1602 = vmatpush1.msra.mxu0 0.0
    %1603 = vmatprep.subr.mxu0 0.0
    %1604 = vmatpush1.msra.mxu0 0.0
    %1605 = vmatprep.subr.mxu0 0.0
    %1606 = vmatpush1.msra.mxu0 0.0
    %1607 = vmatprep.subr.mxu0 0.0
    %1608 = vmatpush1.msra.mxu0 0.0
    %1609 = vmatprep.subr.mxu0 0.0
    %1610 = vmatpush1.msra.mxu0 0.0
    %1611 = vmatprep.subr.mxu0 0.0
    %1612 = vmatpush1.msra.mxu0 0.0
    %1613 = vmatprep.subr.mxu0 0.0
    %1614 = vmatpush1.msra.mxu0 %v1578
    %1615 = vmatprep.subr.mxu0 0.0
    %1616 = vmatpush2.msra.mxu0 0.0
    %1617 = vmatprep.subr.mxu0 0.0
    %1618 = vmatpush2.msra.mxu0 0.0
    %1619 = vmatprep.subr.mxu0 0.0
    %1620 = vmatpush2.msra.mxu0 0.0
    %1621 = vmatprep.subr.mxu0 0.0
    %1622 = vmatpush2.msra.mxu0 0.0
    %1623 = vmatprep.subr.mxu0 0.0
    %1624 = vmatpush2.msra.mxu0 0.0
    %1625 = vmatprep.subr.mxu0 0.0
    %1626 = vmatpush2.msra.mxu0 0.0
    %1627 = vmatprep.subr.mxu0 0.0
    %1628 = vmatpush2.msra.mxu0 0.0
    %1629 = vmatprep.subr.mxu0 0.0
    %1630 = vmatpush2.msra.mxu0 0.0
    %1631 = vmatprep.subr.mxu0 0.0
    %1632 = vmatpush2.msra.mxu0 0.0
    %1633 = vmatprep.subr.mxu0 0.0
    %1634 = vmatpush2.msra.mxu0 0.0
    %1635 = vmatprep.subr.mxu0 0.0
    %1636 = vmatpush2.msra.mxu0 0.0
    %1637 = vmatprep.subr.mxu0 0.0
    %1638 = vmatpush2.msra.mxu0 0.0
    %1639 = vmatprep.subr.mxu0 0.0
    %1640 = vmatpush2.msra.mxu0 0.0
    %1641 = vmatprep.subr.mxu0 0.0
    %1642 = vmatpush2.msra.mxu0 0.0
    %1643 = vmatprep.subr.mxu0 0.0
    %1644 = vmatpush2.msra.mxu0 0.0
    %1645 = vmatprep.subr.mxu0 0.0
    %1646 = vmatpush2.msra.mxu0 0.0
    %1647 = vmatprep.mubr.f32.mxu0 0.0
    %1648 = vmatmul.mubr.f32.gmra.mxu0 %v1581
    %v1649 = vpop.f32.mrf.mxu0
    %v1650 = vadd.f32 0.0, %v1649
    %v1651 = vpop.f32.mrf.mxu0
    %1652 = vdwg.mxu0
    %1653 = vrot.lane.b32.xlu0 %v394, 32
    %v1654 = vpop.permute.xlu0 %1653
    %v1657 = vsel %vm551, %v1573, 0
    %1659 = vmatprep.subr.mxu0 0.0
    %1660 = vmatpush1.msra.mxu0 0.0
    %1661 = vmatprep.subr.mxu0 0.0
    %1662 = vmatpush1.msra.mxu0 0.0
    %1663 = vmatprep.subr.mxu0 0.0
    %1664 = vmatpush1.msra.mxu0 0.0
    %1665 = vmatprep.subr.mxu0 0.0
    %1666 = vmatpush1.msra.mxu0 0.0
    %1667 = vmatprep.subr.mxu0 0.0
    %1668 = vmatpush1.msra.mxu0 0.0
    %1669 = vmatprep.subr.mxu0 0.0
    %1670 = vmatpush1.msra.mxu0 0.0
    %1671 = vmatprep.subr.mxu0 0.0
    %1672 = vmatpush1.msra.mxu0 0.0
    %1673 = vmatprep.subr.mxu0 0.0
    %1674 = vmatpush1.msra.mxu0 0.0
    %1675 = vmatprep.subr.mxu0 0.0
    %1676 = vmatpush1.msra.mxu0 0.0
    %1677 = vmatprep.subr.mxu0 0.0
    %1678 = vmatpush1.msra.mxu0 0.0
    %1679 = vmatprep.subr.mxu0 0.0
    %1680 = vmatpush1.msra.mxu0 0.0
    %1681 = vmatprep.subr.mxu0 0.0
    %1682 = vmatpush1.msra.mxu0 0.0
    %1683 = vmatprep.subr.mxu0 0.0
    %1684 = vmatpush1.msra.mxu0 0.0
    %1685 = vmatprep.subr.mxu0 0.0
    %1686 = vmatpush1.msra.mxu0 0.0
    %1687 = vmatprep.subr.mxu0 0.0
    %1688 = vmatpush1.msra.mxu0 0.0
    %1689 = vmatprep.subr.mxu0 0.0
    %1690 = vmatpush1.msra.mxu0 %v1654
    %1691 = vmatprep.subr.mxu0 0.0
    %1692 = vmatpush2.msra.mxu0 0.0
    %1693 = vmatprep.subr.mxu0 0.0
    %1694 = vmatpush2.msra.mxu0 0.0
    %1695 = vmatprep.subr.mxu0 0.0
    %1696 = vmatpush2.msra.mxu0 0.0
    %1697 = vmatprep.subr.mxu0 0.0
    %1698 = vmatpush2.msra.mxu0 0.0
    %1699 = vmatprep.subr.mxu0 0.0
    %1700 = vmatpush2.msra.mxu0 0.0
    %1701 = vmatprep.subr.mxu0 0.0
    %1702 = vmatpush2.msra.mxu0 0.0
    %1703 = vmatprep.subr.mxu0 0.0
    %1704 = vmatpush2.msra.mxu0 0.0
    %1705 = vmatprep.subr.mxu0 0.0
    %1706 = vmatpush2.msra.mxu0 0.0
    %1707 = vmatprep.subr.mxu0 0.0
    %1708 = vmatpush2.msra.mxu0 0.0
    %1709 = vmatprep.subr.mxu0 0.0
    %1710 = vmatpush2.msra.mxu0 0.0
    %1711 = vmatprep.subr.mxu0 0.0
    %1712 = vmatpush2.msra.mxu0 0.0
    %1713 = vmatprep.subr.mxu0 0.0
    %1714 = vmatpush2.msra.mxu0 0.0
    %1715 = vmatprep.subr.mxu0 0.0
    %1716 = vmatpush2.msra.mxu0 0.0
    %1717 = vmatprep.subr.mxu0 0.0
    %1718 = vmatpush2.msra.mxu0 0.0
    %1719 = vmatprep.subr.mxu0 0.0
    %1720 = vmatpush2.msra.mxu0 0.0
    %1721 = vmatprep.subr.mxu0 0.0
    %1722 = vmatpush2.msra.mxu0 0.0
    %1723 = vmatprep.mubr.f32.mxu0 0.0
    %1724 = vmatmul.mubr.f32.gmra.mxu0 %v1657
    %v1725 = vpop.f32.mrf.mxu0
    %v1726 = vadd.f32 0.0, %v1725
    %v1727 = vpop.f32.mrf.mxu0
    %1728 = vdwg.mxu0
    %1731 = vrot.lane.b32.xlu0 %v979, 32
    %v1732 = vpop.permute.xlu0 %1731
    %1733 = vrot.lane.b32.xlu0 %v1056, 32
    %v1734 = vpop.permute.xlu0 %1733
    %1739 = vrot.lane.b32.xlu0 %v1315, 64
    %v1740 = vpop.permute.xlu0 %1739
    %1741 = vrot.lane.b32.xlu0 %v1391, 64
    %v1742 = vpop.permute.xlu0 %1741
    %1747 = vrot.lane.b32.xlu0 %v1650, 96
    %v1748 = vpop.permute.xlu0 %1747
    %1749 = vrot.lane.b32.xlu0 %v1726, 96
    %v1750 = vpop.permute.xlu0 %1749
    %v1753 = vsel %vm94, %v646, %v1732
    %v1754 = vsel %vm94, %v719, %v1734
    %vm1755 = vcmask 523264
    %v1756 = vsel %vm1755, %v1753, %v1740
    %v1757 = vsel %vm1755, %v1754, %v1742
    %vm1758 = vcmask 785408
    %v1759 = vsel %vm1758, %v1756, %v1748
    %v1760 = vsel %vm1758, %v1757, %v1750
    %v1761 = vld [vmem:[%s2] sm:$0xff]
    %v1762 = vld [vmem:[%s2 + $0x8] sm:$0xff]
    %v1763 = vld [vmem:[%s2 + $0x10] sm:$0xff]
    %v1764 = vld [vmem:[%s2 + $0x18] sm:$0xff]
    %v1765 = vld [vmem:[%s3] sm:$0x1]
    %v1767 = vlaneseq
    %v1768 = vshrl.u32 %v1767, 7
    %v1769 = vsub.s32 0, %v1768
    %v1770 = vrot.slane %v1765, %v1769
    %1772 = vmatprep.subr.mxu0 0.0
    %1773 = vmatpush1.xpose.msra.mxu0 0.0
    %1774 = vmatprep.subr.mxu0 0.0
    %1775 = vmatpush1.xpose.msra.mxu0 0.0
    %1776 = vmatprep.subr.mxu0 0.0
    %1777 = vmatpush1.xpose.msra.mxu0 0.0
    %1778 = vmatprep.subr.mxu0 0.0
    %1779 = vmatpush1.xpose.msra.mxu0 0.0
    %1780 = vmatprep.subr.mxu0 0.0
    %1781 = vmatpush1.xpose.msra.mxu0 0.0
    %1782 = vmatprep.subr.mxu0 0.0
    %1783 = vmatpush1.xpose.msra.mxu0 0.0
    %1784 = vmatprep.subr.mxu0 0.0
    %1785 = vmatpush1.xpose.msra.mxu0 0.0
    %1786 = vmatprep.subr.mxu0 0.0
    %1787 = vmatpush1.xpose.msra.mxu0 0.0
    %1788 = vmatprep.subr.mxu0 0.0
    %1789 = vmatpush1.xpose.msra.mxu0 0.0
    %1790 = vmatprep.subr.mxu0 0.0
    %1791 = vmatpush1.xpose.msra.mxu0 0.0
    %1792 = vmatprep.subr.mxu0 0.0
    %1793 = vmatpush1.xpose.msra.mxu0 0.0
    %1794 = vmatprep.subr.mxu0 0.0
    %1795 = vmatpush1.xpose.msra.mxu0 0.0
    %1796 = vmatprep.subr.mxu0 0.0
    %1797 = vmatpush1.xpose.msra.mxu0 %v1764
    %1798 = vmatprep.subr.mxu0 0.0
    %1799 = vmatpush1.xpose.msra.mxu0 %v1763
    %1800 = vmatprep.subr.mxu0 0.0
    %1801 = vmatpush1.xpose.msra.mxu0 %v1762
    %1802 = vmatprep.subr.mxu0 0.0
    %1803 = vmatpush1.xpose.msra.mxu0 %v1761
    %1804 = vmatprep.subr.mxu0 0.0
    %1805 = vmatpush2.xpose.msra.mxu0 0.0
    %1806 = vmatprep.subr.mxu0 0.0
    %1807 = vmatpush2.xpose.msra.mxu0 0.0
    %1808 = vmatprep.subr.mxu0 0.0
    %1809 = vmatpush2.xpose.msra.mxu0 0.0
    %1810 = vmatprep.subr.mxu0 0.0
    %1811 = vmatpush2.xpose.msra.mxu0 0.0
    %1812 = vmatprep.subr.mxu0 0.0
    %1813 = vmatpush2.xpose.msra.mxu0 0.0
    %1814 = vmatprep.subr.mxu0 0.0
    %1815 = vmatpush2.xpose.msra.mxu0 0.0
    %1816 = vmatprep.subr.mxu0 0.0
    %1817 = vmatpush2.xpose.msra.mxu0 0.0
    %1818 = vmatprep.subr.mxu0 0.0
    %1819 = vmatpush2.xpose.msra.mxu0 0.0
    %1820 = vmatprep.subr.mxu0 0.0
    %1821 = vmatpush2.xpose.msra.mxu0 0.0
    %1822 = vmatprep.subr.mxu0 0.0
    %1823 = vmatpush2.xpose.msra.mxu0 0.0
    %1824 = vmatprep.subr.mxu0 0.0
    %1825 = vmatpush2.xpose.msra.mxu0 0.0
    %1826 = vmatprep.subr.mxu0 0.0
    %1827 = vmatpush2.xpose.msra.mxu0 0.0
    %1828 = vmatprep.subr.mxu0 0.0
    %1829 = vmatpush2.xpose.msra.mxu0 0.0
    %1830 = vmatprep.subr.mxu0 0.0
    %1831 = vmatpush2.xpose.msra.mxu0 0.0
    %1832 = vmatprep.subr.mxu0 0.0
    %1833 = vmatpush2.xpose.msra.mxu0 0.0
    %1834 = vmatprep.subr.mxu0 0.0
    %1835 = vmatpush2.xpose.msra.mxu0 0.0
    %1836 = vmatprep.mubr.f32.mxu0 0.0
    %1837 = vmatmul.mubr.f32.gmra.mxu0 %v1759
    %v1838 = vpop.f32.mrf.mxu0
    %v1839 = vadd.f32 %v1770, %v1838
    %v1840 = vpop.f32.mrf.mxu0
    %1841 = vmatprep.mubr.f32.mxu0 0.0
    %1842 = vmatmul.mubr.f32.gmra.mxu0 %v1760
    %v1843 = vpop.f32.mrf.mxu0
    %v1844 = vadd.f32 %v1770, %v1843
    %v1845 = vpop.f32.mrf.mxu0
    %1846 = vdwg.mxu0
    %v1847 = vadd.f32 %v1839, %v44
    %v1848 = vadd.f32 %v1844, %v45
    %v1849 = vsel %vm94, %v1847, 0.0
    %1850 = vadd.xlane.f32.xlu0 %v1849
    %v1851 = vpop.xlane.xlu0 %1850
    %v1852 = vsel %vm94, %v1848, 0.0
    %1853 = vadd.xlane.f32.xlu0 %v1852
    %v1854 = vpop.xlane.xlu0 %1853
    %v1855 = vrcp.pop 32.0
    %v1856 = vmul.f32 %v1851, %v1855
    %v1857 = vmul.f32 %v1854, %v1855
    %v1858 = vsub.f32 %v1847, %v1856
    %v1859 = vsub.f32 %v1848, %v1857
    %v1860 = vmul.f32 %v1858, %v1858
    %v1861 = vmul.f32 %v1859, %v1859
    %v1862 = vsel %vm94, %v1860, 0.0
    %1863 = vadd.xlane.f32.xlu0 %v1862
    %v1864 = vpop.xlane.xlu0 %1863
    %v1865 = vsel %vm94, %v1861, 0.0
    %1866 = vadd.xlane.f32.xlu0 %v1865
    %v1867 = vpop.xlane.xlu0 %1866
    %v1868 = vmul.f32 %v1864, %v1855
    %v1869 = vmul.f32 %v1867, %v1855
    %v1870 = vadd.f32 %v1868, 1e-05
    %v1871 = vadd.f32 %v1869, 1e-05
    %v1872 = vrsqrt.pop %v1870
    %v1873 = vrsqrt.pop %v1871
    %v1874 = vmul.f32 %v1858, %v1872
    %v1875 = vmul.f32 %v1859, %v1873
    %v1876 = vld [vmem:[%s4] sm:$0x1]
    %v1878 = vlaneseq
    %v1879 = vshrl.u32 %v1878, 7
    %v1880 = vsub.s32 0, %v1879
    %v1881 = vrot.slane %v1876, %v1880
    %v1883 = vmul.f32 %v1874, %v1881
    %v1884 = vmul.f32 %v1875, %v1881
    %v1885 = vld [vmem:[%s5] sm:$0x1]
    %v1887 = vlaneseq
    %v1888 = vshrl.u32 %v1887, 7
    %v1889 = vsub.s32 0, %v1888
    %v1890 = vrot.slane %v1885, %v1889
    %v1892 = vadd.f32 %v1883, %v1890
    %v1893 = vadd.f32 %v1884, %v1890
    %v1894 = vld [vmem:[%s6] sm:$0xff]
    %v1895 = vld [vmem:[%s6 + $0x8] sm:$0xff]
    %v1896 = vld [vmem:[%s6 + $0x10] sm:$0xff]
    %v1897 = vld [vmem:[%s6 + $0x18] sm:$0xff]
    %v1898 = vld [vmem:[%s6 + $0x20] sm:$0xff]
    %v1899 = vld [vmem:[%s6 + $0x28] sm:$0xff]
    %v1900 = vld [vmem:[%s6 + $0x30] sm:$0xff]
    %v1901 = vld [vmem:[%s6 + $0x38] sm:$0xff]
    %v1902 = vld [vmem:[%s7] sm:$0x1]
    %v1904 = vlaneseq
    %v1905 = vshrl.u32 %v1904, 7
    %v1906 = vsub.s32 0, %v1905
    %v1907 = vrot.slane %v1902, %v1906
    %v1910 = vsel %vm94, %v1892, 0
    %v1913 = vsel %vm94, %v1893, 0
    %v1916 = vsel %vm94, %v1894, 0
    %v1919 = vsel %vm94, %v1895, 0
    %v1922 = vsel %vm94, %v1896, 0
    %v1925 = vsel %vm94, %v1897, 0
    %v1928 = vsel %vm94, %v1898, 0
    %v1931 = vsel %vm94, %v1899, 0
    %v1934 = vsel %vm94, %v1900, 0
    %v1937 = vsel %vm94, %v1901, 0
    %1939 = vmatprep.subr.mxu0 0.0
    %1940 = vmatpush1.xpose.msra.mxu0 0.0
    %1941 = vmatprep.subr.mxu0 0.0
    %1942 = vmatpush1.xpose.msra.mxu0 0.0
    %1943 = vmatprep.subr.mxu0 0.0
    %1944 = vmatpush1.xpose.msra.mxu0 0.0
    %1945 = vmatprep.subr.mxu0 0.0
    %1946 = vmatpush1.xpose.msra.mxu0 0.0
    %1947 = vmatprep.subr.mxu0 0.0
    %1948 = vmatpush1.xpose.msra.mxu0 0.0
    %1949 = vmatprep.subr.mxu0 0.0
    %1950 = vmatpush1.xpose.msra.mxu0 0.0
    %1951 = vmatprep.subr.mxu0 0.0
    %1952 = vmatpush1.xpose.msra.mxu0 0.0
    %1953 = vmatprep.subr.mxu0 0.0
    %1954 = vmatpush1.xpose.msra.mxu0 0.0
    %1955 = vmatprep.subr.mxu0 0.0
    %1956 = vmatpush1.xpose.msra.mxu0 %v1937
    %1957 = vmatprep.subr.mxu0 0.0
    %1958 = vmatpush1.xpose.msra.mxu0 %v1934
    %1959 = vmatprep.subr.mxu0 0.0
    %1960 = vmatpush1.xpose.msra.mxu0 %v1931
    %1961 = vmatprep.subr.mxu0 0.0
    %1962 = vmatpush1.xpose.msra.mxu0 %v1928
    %1963 = vmatprep.subr.mxu0 0.0
    %1964 = vmatpush1.xpose.msra.mxu0 %v1925
    %1965 = vmatprep.subr.mxu0 0.0
    %1966 = vmatpush1.xpose.msra.mxu0 %v1922
    %1967 = vmatprep.subr.mxu0 0.0
    %1968 = vmatpush1.xpose.msra.mxu0 %v1919
    %1969 = vmatprep.subr.mxu0 0.0
    %1970 = vmatpush1.xpose.msra.mxu0 %v1916
    %1971 = vmatprep.subr.mxu0 0.0
    %1972 = vmatpush2.xpose.msra.mxu0 0.0
    %1973 = vmatprep.subr.mxu0 0.0
    %1974 = vmatpush2.xpose.msra.mxu0 0.0
    %1975 = vmatprep.subr.mxu0 0.0
    %1976 = vmatpush2.xpose.msra.mxu0 0.0
    %1977 = vmatprep.subr.mxu0 0.0
    %1978 = vmatpush2.xpose.msra.mxu0 0.0
    %1979 = vmatprep.subr.mxu0 0.0
    %1980 = vmatpush2.xpose.msra.mxu0 0.0
    %1981 = vmatprep.subr.mxu0 0.0
    %1982 = vmatpush2.xpose.msra.mxu0 0.0
    %1983 = vmatprep.subr.mxu0 0.0
    %1984 = vmatpush2.xpose.msra.mxu0 0.0
    %1985 = vmatprep.subr.mxu0 0.0
    %1986 = vmatpush2.xpose.msra.mxu0 0.0
    %1987 = vmatprep.subr.mxu0 0.0
    %1988 = vmatpush2.xpose.msra.mxu0 0.0
    %1989 = vmatprep.subr.mxu0 0.0
    %1990 = vmatpush2.xpose.msra.mxu0 0.0
    %1991 = vmatprep.subr.mxu0 0.0
    %1992 = vmatpush2.xpose.msra.mxu0 0.0
    %1993 = vmatprep.subr.mxu0 0.0
    %1994 = vmatpush2.xpose.msra.mxu0 0.0
    %1995 = vmatprep.subr.mxu0 0.0
    %1996 = vmatpush2.xpose.msra.mxu0 0.0
    %1997 = vmatprep.subr.mxu0 0.0
    %1998 = vmatpush2.xpose.msra.mxu0 0.0
    %1999 = vmatprep.subr.mxu0 0.0
    %2000 = vmatpush2.xpose.msra.mxu0 0.0
    %2001 = vmatprep.subr.mxu0 0.0
    %2002 = vmatpush2.xpose.msra.mxu0 0.0
    %2003 = vmatprep.mubr.f32.mxu0 0.0
    %2004 = vmatmul.mubr.f32.gmra.mxu0 %v1910
    %v2005 = vpop.f32.mrf.mxu0
    %v2006 = vadd.f32 %v1907, %v2005
    %v2007 = vpop.f32.mrf.mxu0
    %2008 = vmatprep.mubr.f32.mxu0 0.0
    %2009 = vmatmul.mubr.f32.gmra.mxu0 %v1913
    %v2010 = vpop.f32.mrf.mxu0
    %v2011 = vadd.f32 %v1907, %v2010
    %v2012 = vpop.f32.mrf.mxu0
    %2013 = vdwg.mxu0
    %v2014 = vmax.f32 %v2006, 0.0
    %v2015 = vmax.f32 %v2011, 0.0
    %v2016 = vld [vmem:[%s8] sm:$0xff]
    %v2017 = vld [vmem:[%s8 + $0x8] sm:$0xff]
    %v2018 = vld [vmem:[%s8 + $0x10] sm:$0xff]
    %v2019 = vld [vmem:[%s8 + $0x18] sm:$0xff]
    %v2020 = vld [vmem:[%s9] sm:$0x1]
    %v2022 = vlaneseq
    %v2023 = vshrl.u32 %v2022, 7
    %v2024 = vsub.s32 0, %v2023
    %v2025 = vrot.slane %v2020, %v2024
    %v2028 = vsel %vm1755, %v2014, 0
    %v2031 = vsel %vm1755, %v2015, 0
    %v2034 = vsel %vm1755, %v2016, 0
    %v2037 = vsel %vm1755, %v2017, 0
    %v2040 = vsel %vm1755, %v2018, 0
    %v2043 = vsel %vm1755, %v2019, 0
    %2045 = vmatprep.subr.mxu0 0.0
    %2046 = vmatpush1.xpose.msra.mxu0 0.0
    %2047 = vmatprep.subr.mxu0 0.0
    %2048 = vmatpush1.xpose.msra.mxu0 0.0
    %2049 = vmatprep.subr.mxu0 0.0
    %2050 = vmatpush1.xpose.msra.mxu0 0.0
    %2051 = vmatprep.subr.mxu0 0.0
    %2052 = vmatpush1.xpose.msra.mxu0 0.0
    %2053 = vmatprep.subr.mxu0 0.0
    %2054 = vmatpush1.xpose.msra.mxu0 0.0
    %2055 = vmatprep.subr.mxu0 0.0
    %2056 = vmatpush1.xpose.msra.mxu0 0.0
    %2057 = vmatprep.subr.mxu0 0.0
    %2058 = vmatpush1.xpose.msra.mxu0 0.0
    %2059 = vmatprep.subr.mxu0 0.0
    %2060 = vmatpush1.xpose.msra.mxu0 0.0
    %2061 = vmatprep.subr.mxu0 0.0
    %2062 = vmatpush1.xpose.msra.mxu0 0.0
    %2063 = vmatprep.subr.mxu0 0.0
    %2064 = vmatpush1.xpose.msra.mxu0 0.0
    %2065 = vmatprep.subr.mxu0 0.0
    %2066 = vmatpush1.xpose.msra.mxu0 0.0
    %2067 = vmatprep.subr.mxu0 0.0
    %2068 = vmatpush1.xpose.msra.mxu0 0.0
    %2069 = vmatprep.subr.mxu0 0.0
    %2070 = vmatpush1.xpose.msra.mxu0 %v2043
    %2071 = vmatprep.subr.mxu0 0.0
    %2072 = vmatpush1.xpose.msra.mxu0 %v2040
    %2073 = vmatprep.subr.mxu0 0.0
    %2074 = vmatpush1.xpose.msra.mxu0 %v2037
    %2075 = vmatprep.subr.mxu0 0.0
    %2076 = vmatpush1.xpose.msra.mxu0 %v2034
    %2077 = vmatprep.subr.mxu0 0.0
    %2078 = vmatpush2.xpose.msra.mxu0 0.0
    %2079 = vmatprep.subr.mxu0 0.0
    %2080 = vmatpush2.xpose.msra.mxu0 0.0
    %2081 = vmatprep.subr.mxu0 0.0
    %2082 = vmatpush2.xpose.msra.mxu0 0.0
    %2083 = vmatprep.subr.mxu0 0.0
    %2084 = vmatpush2.xpose.msra.mxu0 0.0
    %2085 = vmatprep.subr.mxu0 0.0
    %2086 = vmatpush2.xpose.msra.mxu0 0.0
    %2087 = vmatprep.subr.mxu0 0.0
    %2088 = vmatpush2.xpose.msra.mxu0 0.0
    %2089 = vmatprep.subr.mxu0 0.0
    %2090 = vmatpush2.xpose.msra.mxu0 0.0
    %2091 = vmatprep.subr.mxu0 0.0
    %2092 = vmatpush2.xpose.msra.mxu0 0.0
    %2093 = vmatprep.subr.mxu0 0.0
    %2094 = vmatpush2.xpose.msra.mxu0 0.0
    %2095 = vmatprep.subr.mxu0 0.0
    %2096 = vmatpush2.xpose.msra.mxu0 0.0
    %2097 = vmatprep.subr.mxu0 0.0
    %2098 = vmatpush2.xpose.msra.mxu0 0.0
    %2099 = vmatprep.subr.mxu0 0.0
    %2100 = vmatpush2.xpose.msra.mxu0 0.0
    %2101 = vmatprep.subr.mxu0 0.0
    %2102 = vmatpush2.xpose.msra.mxu0 0.0
    %2103 = vmatprep.subr.mxu0 0.0
    %2104 = vmatpush2.xpose.msra.mxu0 0.0
    %2105 = vmatprep.subr.mxu0 0.0
    %2106 = vmatpush2.xpose.msra.mxu0 0.0
    %2107 = vmatprep.subr.mxu0 0.0
    %2108 = vmatpush2.xpose.msra.mxu0 0.0
    %2109 = vmatprep.mubr.f32.mxu0 0.0
    %2110 = vmatmul.mubr.f32.gmra.mxu0 %v2028
    %v2111 = vpop.f32.mrf.mxu0
    %v2112 = vadd.f32 %v2025, %v2111
    %v2113 = vpop.f32.mrf.mxu0
    %2114 = vmatprep.mubr.f32.mxu0 0.0
    %2115 = vmatmul.mubr.f32.gmra.mxu0 %v2031
    %v2116 = vpop.f32.mrf.mxu0
    %v2117 = vadd.f32 %v2025, %v2116
    %v2118 = vpop.f32.mrf.mxu0
    %2119 = vdwg.mxu0
    %v2120 = vadd.f32 %v2112, %v1892
    %v2121 = vadd.f32 %v2117, %v1893
    %v2122 = vsel %vm94, %v2120, 0.0
    %2123 = vadd.xlane.f32.xlu0 %v2122
    %v2124 = vpop.xlane.xlu0 %2123
    %v2125 = vsel %vm94, %v2121, 0.0
    %2126 = vadd.xlane.f32.xlu0 %v2125
    %v2127 = vpop.xlane.xlu0 %2126
    %v2128 = vmul.f32 %v2124, %v1855
    %v2129 = vmul.f32 %v2127, %v1855
    %v2130 = vsub.f32 %v2120, %v2128
    %v2131 = vsub.f32 %v2121, %v2129
    %v2132 = vmul.f32 %v2130, %v2130
    %v2133 = vmul.f32 %v2131, %v2131
    %v2134 = vsel %vm94, %v2132, 0.0
    %2135 = vadd.xlane.f32.xlu0 %v2134
    %v2136 = vpop.xlane.xlu0 %2135
    %v2137 = vsel %vm94, %v2133, 0.0
    %2138 = vadd.xlane.f32.xlu0 %v2137
    %v2139 = vpop.xlane.xlu0 %2138
    %v2140 = vmul.f32 %v2136, %v1855
    %v2141 = vmul.f32 %v2139, %v1855
    %v2142 = vadd.f32 %v2140, 1e-05
    %v2143 = vadd.f32 %v2141, 1e-05
    %v2144 = vrsqrt.pop %v2142
    %v2145 = vrsqrt.pop %v2143
    %v2146 = vmul.f32 %v2130, %v2144
    %v2147 = vmul.f32 %v2131, %v2145
    %v2148 = vld [vmem:[%s10] sm:$0x1]
    %v2150 = vlaneseq
    %v2151 = vshrl.u32 %v2150, 7
    %v2152 = vsub.s32 0, %v2151
    %v2153 = vrot.slane %v2148, %v2152
    %v2155 = vmul.f32 %v2146, %v2153
    %v2156 = vmul.f32 %v2147, %v2153
    %v2157 = vld [vmem:[%s11] sm:$0x1]
    %v2159 = vlaneseq
    %v2160 = vshrl.u32 %v2159, 7
    %v2161 = vsub.s32 0, %v2160
    %v2162 = vrot.slane %v2157, %v2161
    %v2164 = vadd.f32 %v2155, %v2162
    %v2165 = vadd.f32 %v2156, %v2162
    %2166 = vst.msk [vmem:[#allocation2] sm:$0xff] %vm94, %v2164
    %2167 = vst.msk [vmem:[#allocation2 + $0x8] sm:$0xff] %vm94, %v2165
    // Predicated region
    $region50: #{transformer_unit_pallas.1} parent=1 // pred_check
      _
    $region51: #{transformer_unit_pallas.1} parent=1 // pred_check_branch
      %2169 = sbr.rel (0) target = $region53
    $region52: #{transformer_unit_pallas.1} parent=1 // pred_region
      %s2171 = ssub.s32 256, 256
      %2172 = vsyncadd [#allocation3], %s2171
      %s2173 = sshll.u32 [#allocation2], 4
      %s2174 = int_to_ptr.vmem [resolvable:$true] %s2173
      %2179 = dma.vmem_to_hbm [thread:$0]  %s2174, 256, %s12, [#allocation3], 128, 128, 8
    $region53: #{transformer_unit_pallas.1} parent=1 // pred_fallthru
      _
    // Predicated region
    $region54: #{transformer_unit_pallas.1} parent=1 // pred_check
      _
    $region55: #{transformer_unit_pallas.1} parent=1 // pred_check_branch
      %2181 = sbr.rel (0) target = $region57
    $region56: #{transformer_unit_pallas.1} parent=1 // pred_region
      _
    $region57: #{transformer_unit_pallas.1} parent=1 // pred_fallthru
      _
    // Predicated region
    $region58: #{transformer_unit_pallas.1} parent=1 // pred_check
      _
    $region59: #{transformer_unit_pallas.1} parent=1 // pred_check_branch
      %2183 = sbr.rel (0) target = $region61
    $region60: #{transformer_unit_pallas.1} parent=1 // pred_region
      %2184 = dma.done [#allocation3], 256
    $region61: #{transformer_unit_pallas.1} parent=1 // pred_fallthru
      _
    // Predicated region
    $region62: #{transformer_unit_pallas.1} parent=1 // pred_check
      _
    $region63: #{transformer_unit_pallas.1} parent=1 // pred_check_branch
      %2186 = sbr.rel (0) target = $region65
    $region64: #{transformer_unit_pallas.1} parent=1 // pred_region
      _
    $region65: #{transformer_unit_pallas.1} parent=1 // pred_fallthru
      _
    %2187 = vsyncpa [#allocation3], 1

</llo_original>
